<compile_context>
chip_gen: v7x
topology: tpu7x:2x2x1
jax: 0.10.0
libtpu: 0.0.40
codegen_flags: <defaults>
</compile_context>

<pallas_src>
import functools
import math

import jax
import jax.numpy as jnp
from jax import lax
from jax.experimental import pallas as pl
from jax.experimental.pallas import tpu as pltpu


# ---------------------------------------------------------------------------
# Fused Pallas kernel: conv-on-pooled-patches (matmul) -> Linear -> ReLU ->
# Linear -> Softmax(dim=0).  All intermediates live in VMEM / vregs.
# ---------------------------------------------------------------------------
def cnn2d_fused_kernel(pp_ref, wc_ref, bc_ref, w1g_ref, b1_ref, w2_ref,
                       b2_ref, out_ref):
    n = out_ref.shape[0]            # batch (2)
    p_cnt = w1g_ref.shape[0]        # pooled spatial positions Hp*Wp (15)
    hid_pad = w1g_ref.shape[2]      # padded hidden width (256)

    # Conv2d(1, 16, 5, 'same') fused with AvgPool2d(4): the input is already
    # the 4x4-averaged im2col patch matrix, so a single micro-matmul
    #   (Hp*Wp*N, 25) @ (25, 16) -> (Hp*Wp*N, 16)
    # yields the pooled conv activations.  Bias added after the pool (pooling
    # a per-channel constant leaves it unchanged).
    pooled = jnp.dot(pp_ref[...], wc_ref[...],
                     preferred_element_type=jnp.float32) + bc_ref[...]

    # torch.flatten(NCHW) + Linear(240, 240):
    #   hidden[n, k] = sum_{p, c} pooled[p*N + n, c] * W1[c*P + p, k] + b1[k]
    # as a static sum of per-pool-position matmuls (the NCHW channel/spatial
    # interleave never needs an in-kernel relayout).  Four independent
    # accumulators break the 15-deep serial matmul->add chain.
    n_acc = 4
    accs = [jnp.zeros((n, hid_pad), jnp.float32) for _ in range(n_acc)]
    accs[0] = jnp.broadcast_to(b1_ref[...], (n, hid_pad))
    for p in range(p_cnt):                                    # static unroll
        accs[p % n_acc] = accs[p % n_acc] + jnp.dot(
            pooled[p * n:(p + 1) * n, :], w1g_ref[p],
            preferred_element_type=jnp.float32)
    acc = (accs[0] + accs[1]) + (accs[2] + accs[3])
    h = jnp.maximum(acc, 0.0)                                 # ReLU

    # Linear(240, num_classes) on padded (256 -> 128) tiles.
    logits = jnp.dot(h, w2_ref[...],
                     preferred_element_type=jnp.float32) + b2_ref[...]

    # Softmax over dim 0 (the batch), exactly as nn.Softmax(dim=0).
    m = jnp.max(logits, axis=0, keepdims=True)
    e = jnp.exp(logits - m)
    inv = pl.reciprocal(jnp.sum(e, axis=0, keepdims=True), approx=False)
    out_ref[...] = e * inv


# ---------------------------------------------------------------------------
# Forward pass.  The only input-dependent XLA glue is the im2col patch
# extraction + 4x4 patch averaging (one small fusion, ~3 KiB result);
# all weight-side prep is reshape / permute / zero-pad.
# ---------------------------------------------------------------------------
@functools.partial(jax.jit, static_argnames=("num_classes",))
def cnn2d_forward(x, params, num_classes):
    w_conv, b_conv, w1, b1, w2, b2 = params
    N, _, H, W = x.shape
    C, K = 16, 5
    Hp, Wp = H // 4, W // 4
    P = Hp * Wp                      # pooled spatial positions (15)
    HID = w1.shape[0]                # 240
    HID_PAD = -(-HID // 128) * 128   # 256
    NC_PAD = -(-num_classes // 128) * 128  # 128

    # ---- input-side glue: pad + im2col + fold the 4x4 average pool ---------
    # TODO(synk): im2col / patch pre-pooling stays in XLA; building it
    # in-kernel would need lane<->sublane relayouts that Mosaic handles poorly.
    xp = jnp.pad(x[:, 0], ((0, 0), (2, 2), (2, 2)))           # 'same' for 5x5
    patches = jnp.stack(
        [xp[:, kh:kh + H, kw:kw + W] for kh in range(K) for kw in range(K)],
        axis=-1,
    )                                                         # (N, H, W, 25)
    # Average each patch vector over its 4x4 pool window, then order rows as
    # (pool_pos, batch) so the kernel slices contiguous N-row blocks per p.
    pooled_patches = patches.reshape(N, Hp, 4, Wp, 4, K * K).mean(axis=(2, 4))
    pp = pooled_patches.reshape(N, P, K * K).transpose(1, 0, 2)
    pp = pp.reshape(P * N, K * K)                             # (30, 25)

    # ---- weight-side glue (pure reshape / permute / zero-pad) --------------
    wc_flat = w_conv.reshape(C, K * K).T                      # (25, 16)
    bc = b_conv.reshape(1, C)                                 # (1, 16)
    # W1 rows regrouped by pool position: W1g[p, c, :] = W1[c*P + p, :]
    w1g = jnp.pad(w1.reshape(C, P, HID).transpose(1, 0, 2),
                  ((0, 0), (0, 0), (0, HID_PAD - HID)))       # (15, 16, 256)
    b1p = jnp.pad(b1, ((0, 0), (0, HID_PAD - HID)))           # (1, 256)
    w2p = jnp.pad(w2, ((0, HID_PAD - HID), (0, NC_PAD - num_classes)))
    b2p = jnp.pad(b2, ((0, 0), (0, NC_PAD - num_classes)))    # (1, 128)

    # ---- single fused Pallas kernel (every operand VMEM-resident) ----------
    vmem = lambda: pl.BlockSpec(memory_space=pltpu.MemorySpace.VMEM)
    out_padded = pl.pallas_call(
        cnn2d_fused_kernel,
        out_shape=jax.ShapeDtypeStruct((N, NC_PAD), jnp.float32),
        in_specs=[vmem() for _ in range(7)],
        out_specs=vmem(),
    )(pp, wc_flat, bc, w1g, b1p, w2p, b2p)

    return out_padded[:, :num_classes]


# ---------------------------------------------------------------------------
# Pure-JAX reference (correctness sanity check)
# ---------------------------------------------------------------------------
def cnn2d_reference(x, params, num_classes):
    w_conv, b_conv, w1, b1, w2, b2 = params
    N, _, H, W = x.shape
    Hp, Wp = H // 4, W // 4
    conv = lax.conv_general_dilated(
        x, w_conv, (1, 1), "SAME", dimension_numbers=("NCHW", "OIHW", "NCHW")
    ) + b_conv.reshape(1, 16, 1, 1)
    pooled = conv.reshape(N, 16, Hp, 4, Wp, 4).mean(axis=(3, 5))
    flat = pooled.reshape(N, 16 * Hp * Wp)
    h = jnp.maximum(flat @ w1 + b1, 0.0)
    o = h @ w2 + b2
    return jax.nn.softmax(o, axis=0)


# ---------------------------------------------------------------------------
def init_params(key, num_classes):
    k = jax.random.split(key, 6)
    # Deterministic synthetic init (shapes match nn.Module __init__).
    w_conv = jax.random.uniform(k[0], (16, 1, 5, 5), jnp.float32, -0.2, 0.2)
    b_conv = jax.random.uniform(k[1], (16,), jnp.float32, -0.2, 0.2)
    s1 = 1.0 / math.sqrt(240.0)
    # Linear weights stored already transposed: y = x @ W + b.
    w1 = jax.random.uniform(k[2], (240, 240), jnp.float32, -s1, s1)
    b1 = jax.random.uniform(k[3], (1, 240), jnp.float32, -s1, s1)
    w2 = jax.random.uniform(k[4], (240, num_classes), jnp.float32, -s1, s1)
    b2 = jax.random.uniform(k[5], (1, num_classes), jnp.float32, -s1, s1)
    return (w_conv, b_conv, w1, b1, w2, b2)


if __name__ == "__main__":
    num_classes = 10
    N, H, W = 2, 12, 20  # 16 * (12/4) * (20/4) = 240 flattened features

    key = jax.random.PRNGKey(0)
    kx, kp = jax.random.split(key)
    x = jax.random.normal(kx, (N, 1, H, W), jnp.float32)
    params = init_params(kp, num_classes)

    out = cnn2d_forward(x, params, num_classes)
    out = jax.block_until_ready(out)

    ref = cnn2d_reference(x, params, num_classes)
    assert out.shape == (N, num_classes)
    assert jnp.allclose(out, ref, atol=5e-3, rtol=5e-3), "mismatch vs reference"
    # softmax(dim=0): each class column sums to ~1 over the batch.
    assert jnp.allclose(out.sum(axis=0), jnp.ones((num_classes,)), atol=5e-3)

    print("KERNEL_OK")
</pallas_src>

<mosaic_0001>
module attributes {stable_mosaic.version = 11 : i64} {
  func.func @cnn2d_fused_kernel(%arg0: memref<30x25xf32, #tpu.memory_space<vmem>>, %arg1: memref<25x16xf32, #tpu.memory_space<vmem>>, %arg2: memref<1x16xf32, #tpu.memory_space<vmem>>, %arg3: memref<15x16x256xf32, #tpu.memory_space<vmem>>, %arg4: memref<1x256xf32, #tpu.memory_space<vmem>>, %arg5: memref<256x128xf32, #tpu.memory_space<vmem>>, %arg6: memref<1x128xf32, #tpu.memory_space<vmem>>, %arg7: memref<2x128xf32, #tpu.memory_space<vmem>>) attributes {dimension_semantics = [], scalar_prefetch = 0 : i64, scratch_operands = 0 : i64, tpu.core_type = #tpu.core_type<tc>} {
    %c0 = arith.constant 0 : index
    %c0_0 = arith.constant 0 : index
    %0 = vector.load %arg0[%c0, %c0_0] : memref<30x25xf32, #tpu.memory_space<vmem>>, vector<30x25xf32>
    %c0_1 = arith.constant 0 : index
    %c0_2 = arith.constant 0 : index
    %1 = vector.load %arg1[%c0_1, %c0_2] : memref<25x16xf32, #tpu.memory_space<vmem>>, vector<25x16xf32>
    %cst = arith.constant dense<0.000000e+00> : vector<30x16xf32>
    %2 = tpu.matmul %0, %1, %cst {dimension_numbers = #tpu.dot_dimension_numbers<[1], [0], [0], [1], [0, 0, 1, 1], [], []>} : vector<30x25xf32>, vector<25x16xf32>, vector<30x16xf32> -> vector<30x16xf32>
    %c0_3 = arith.constant 0 : index
    %c0_4 = arith.constant 0 : index
    %3 = vector.load %arg2[%c0_3, %c0_4] : memref<1x16xf32, #tpu.memory_space<vmem>>, vector<1x16xf32>
    %4 = vector.broadcast %3 : vector<1x16xf32> to vector<30x16xf32>
    %5 = arith.addf %2, %4 : vector<30x16xf32>
    %cst_5 = arith.constant 0.000000e+00 : f32
    %6 = vector.broadcast %cst_5 : f32 to vector<2x256xf32>
    %cst_6 = arith.constant 0.000000e+00 : f32
    %7 = vector.broadcast %cst_6 : f32 to vector<2x256xf32>
    %cst_7 = arith.constant 0.000000e+00 : f32
    %8 = vector.broadcast %cst_7 : f32 to vector<2x256xf32>
    %c0_8 = arith.constant 0 : index
    %c0_9 = arith.constant 0 : index
    %9 = vector.load %arg4[%c0_8, %c0_9] : memref<1x256xf32, #tpu.memory_space<vmem>>, vector<1x256xf32>
    %10 = vector.shape_cast %9 : vector<1x256xf32> to vector<1x256xf32>
    %11 = vector.broadcast %10 : vector<1x256xf32> to vector<2x256xf32>
    %12 = vector.extract_strided_slice %5 {offsets = [0, 0], sizes = [2, 16], strides = [1, 1]} : vector<30x16xf32> to vector<2x16xf32>
    %c0_10 = arith.constant 0 : index
    %c0_11 = arith.constant 0 : index
    %c0_12 = arith.constant 0 : index
    %13 = vector.load %arg3[%c0_10, %c0_11, %c0_12] : memref<15x16x256xf32, #tpu.memory_space<vmem>>, vector<1x16x256xf32>
    %14 = vector.shape_cast %13 : vector<1x16x256xf32> to vector<16x256xf32>
    %cst_13 = arith.constant dense<0.000000e+00> : vector<2x256xf32>
    %15 = tpu.matmul %12, %14, %cst_13 {dimension_numbers = #tpu.dot_dimension_numbers<[1], [0], [0], [1], [0, 0, 1, 1], [], []>} : vector<2x16xf32>, vector<16x256xf32>, vector<2x256xf32> -> vector<2x256xf32>
    %16 = arith.addf %11, %15 : vector<2x256xf32>
    %17 = vector.extract_strided_slice %5 {offsets = [2, 0], sizes = [2, 16], strides = [1, 1]} : vector<30x16xf32> to vector<2x16xf32>
    %c1 = arith.constant 1 : index
    %c0_14 = arith.constant 0 : index
    %c0_15 = arith.constant 0 : index
    %18 = vector.load %arg3[%c1, %c0_14, %c0_15] : memref<15x16x256xf32, #tpu.memory_space<vmem>>, vector<1x16x256xf32>
    %19 = vector.shape_cast %18 : vector<1x16x256xf32> to vector<16x256xf32>
    %cst_16 = arith.constant dense<0.000000e+00> : vector<2x256xf32>
    %20 = tpu.matmul %17, %19, %cst_16 {dimension_numbers = #tpu.dot_dimension_numbers<[1], [0], [0], [1], [0, 0, 1, 1], [], []>} : vector<2x16xf32>, vector<16x256xf32>, vector<2x256xf32> -> vector<2x256xf32>
    %21 = arith.addf %6, %20 : vector<2x256xf32>
    %22 = vector.extract_strided_slice %5 {offsets = [4, 0], sizes = [2, 16], strides = [1, 1]} : vector<30x16xf32> to vector<2x16xf32>
    %c2 = arith.constant 2 : index
    %c0_17 = arith.constant 0 : index
    %c0_18 = arith.constant 0 : index
    %23 = vector.load %arg3[%c2, %c0_17, %c0_18] : memref<15x16x256xf32, #tpu.memory_space<vmem>>, vector<1x16x256xf32>
    %24 = vector.shape_cast %23 : vector<1x16x256xf32> to vector<16x256xf32>
    %cst_19 = arith.constant dense<0.000000e+00> : vector<2x256xf32>
    %25 = tpu.matmul %22, %24, %cst_19 {dimension_numbers = #tpu.dot_dimension_numbers<[1], [0], [0], [1], [0, 0, 1, 1], [], []>} : vector<2x16xf32>, vector<16x256xf32>, vector<2x256xf32> -> vector<2x256xf32>
    %26 = arith.addf %7, %25 : vector<2x256xf32>
    %27 = vector.extract_strided_slice %5 {offsets = [6, 0], sizes = [2, 16], strides = [1, 1]} : vector<30x16xf32> to vector<2x16xf32>
    %c3 = arith.constant 3 : index
    %c0_20 = arith.constant 0 : index
    %c0_21 = arith.constant 0 : index
    %28 = vector.load %arg3[%c3, %c0_20, %c0_21] : memref<15x16x256xf32, #tpu.memory_space<vmem>>, vector<1x16x256xf32>
    %29 = vector.shape_cast %28 : vector<1x16x256xf32> to vector<16x256xf32>
    %cst_22 = arith.constant dense<0.000000e+00> : vector<2x256xf32>
    %30 = tpu.matmul %27, %29, %cst_22 {dimension_numbers = #tpu.dot_dimension_numbers<[1], [0], [0], [1], [0, 0, 1, 1], [], []>} : vector<2x16xf32>, vector<16x256xf32>, vector<2x256xf32> -> vector<2x256xf32>
    %31 = arith.addf %8, %30 : vector<2x256xf32>
    %32 = vector.extract_strided_slice %5 {offsets = [8, 0], sizes = [2, 16], strides = [1, 1]} : vector<30x16xf32> to vector<2x16xf32>
    %c4 = arith.constant 4 : index
    %c0_23 = arith.constant 0 : index
    %c0_24 = arith.constant 0 : index
    %33 = vector.load %arg3[%c4, %c0_23, %c0_24] : memref<15x16x256xf32, #tpu.memory_space<vmem>>, vector<1x16x256xf32>
    %34 = vector.shape_cast %33 : vector<1x16x256xf32> to vector<16x256xf32>
    %cst_25 = arith.constant dense<0.000000e+00> : vector<2x256xf32>
    %35 = tpu.matmul %32, %34, %cst_25 {dimension_numbers = #tpu.dot_dimension_numbers<[1], [0], [0], [1], [0, 0, 1, 1], [], []>} : vector<2x16xf32>, vector<16x256xf32>, vector<2x256xf32> -> vector<2x256xf32>
    %36 = arith.addf %16, %35 : vector<2x256xf32>
    %37 = vector.extract_strided_slice %5 {offsets = [10, 0], sizes = [2, 16], strides = [1, 1]} : vector<30x16xf32> to vector<2x16xf32>
    %c5 = arith.constant 5 : index
    %c0_26 = arith.constant 0 : index
    %c0_27 = arith.constant 0 : index
    %38 = vector.load %arg3[%c5, %c0_26, %c0_27] : memref<15x16x256xf32, #tpu.memory_space<vmem>>, vector<1x16x256xf32>
    %39 = vector.shape_cast %38 : vector<1x16x256xf32> to vector<16x256xf32>
    %cst_28 = arith.constant dense<0.000000e+00> : vector<2x256xf32>
    %40 = tpu.matmul %37, %39, %cst_28 {dimension_numbers = #tpu.dot_dimension_numbers<[1], [0], [0], [1], [0, 0, 1, 1], [], []>} : vector<2x16xf32>, vector<16x256xf32>, vector<2x256xf32> -> vector<2x256xf32>
    %41 = arith.addf %21, %40 : vector<2x256xf32>
    %42 = vector.extract_strided_slice %5 {offsets = [12, 0], sizes = [2, 16], strides = [1, 1]} : vector<30x16xf32> to vector<2x16xf32>
    %c6 = arith.constant 6 : index
    %c0_29 = arith.constant 0 : index
    %c0_30 = arith.constant 0 : index
    %43 = vector.load %arg3[%c6, %c0_29, %c0_30] : memref<15x16x256xf32, #tpu.memory_space<vmem>>, vector<1x16x256xf32>
    %44 = vector.shape_cast %43 : vector<1x16x256xf32> to vector<16x256xf32>
    %cst_31 = arith.constant dense<0.000000e+00> : vector<2x256xf32>
    %45 = tpu.matmul %42, %44, %cst_31 {dimension_numbers = #tpu.dot_dimension_numbers<[1], [0], [0], [1], [0, 0, 1, 1], [], []>} : vector<2x16xf32>, vector<16x256xf32>, vector<2x256xf32> -> vector<2x256xf32>
    %46 = arith.addf %26, %45 : vector<2x256xf32>
    %47 = vector.extract_strided_slice %5 {offsets = [14, 0], sizes = [2, 16], strides = [1, 1]} : vector<30x16xf32> to vector<2x16xf32>
    %c7 = arith.constant 7 : index
    %c0_32 = arith.constant 0 : index
    %c0_33 = arith.constant 0 : index
    %48 = vector.load %arg3[%c7, %c0_32, %c0_33] : memref<15x16x256xf32, #tpu.memory_space<vmem>>, vector<1x16x256xf32>
    %49 = vector.shape_cast %48 : vector<1x16x256xf32> to vector<16x256xf32>
    %cst_34 = arith.constant dense<0.000000e+00> : vector<2x256xf32>
    %50 = tpu.matmul %47, %49, %cst_34 {dimension_numbers = #tpu.dot_dimension_numbers<[1], [0], [0], [1], [0, 0, 1, 1], [], []>} : vector<2x16xf32>, vector<16x256xf32>, vector<2x256xf32> -> vector<2x256xf32>
    %51 = arith.addf %31, %50 : vector<2x256xf32>
    %52 = vector.extract_strided_slice %5 {offsets = [16, 0], sizes = [2, 16], strides = [1, 1]} : vector<30x16xf32> to vector<2x16xf32>
    %c8 = arith.constant 8 : index
    %c0_35 = arith.constant 0 : index
    %c0_36 = arith.constant 0 : index
    %53 = vector.load %arg3[%c8, %c0_35, %c0_36] : memref<15x16x256xf32, #tpu.memory_space<vmem>>, vector<1x16x256xf32>
    %54 = vector.shape_cast %53 : vector<1x16x256xf32> to vector<16x256xf32>
    %cst_37 = arith.constant dense<0.000000e+00> : vector<2x256xf32>
    %55 = tpu.matmul %52, %54, %cst_37 {dimension_numbers = #tpu.dot_dimension_numbers<[1], [0], [0], [1], [0, 0, 1, 1], [], []>} : vector<2x16xf32>, vector<16x256xf32>, vector<2x256xf32> -> vector<2x256xf32>
    %56 = arith.addf %36, %55 : vector<2x256xf32>
    %57 = vector.extract_strided_slice %5 {offsets = [18, 0], sizes = [2, 16], strides = [1, 1]} : vector<30x16xf32> to vector<2x16xf32>
    %c9 = arith.constant 9 : index
    %c0_38 = arith.constant 0 : index
    %c0_39 = arith.constant 0 : index
    %58 = vector.load %arg3[%c9, %c0_38, %c0_39] : memref<15x16x256xf32, #tpu.memory_space<vmem>>, vector<1x16x256xf32>
    %59 = vector.shape_cast %58 : vector<1x16x256xf32> to vector<16x256xf32>
    %cst_40 = arith.constant dense<0.000000e+00> : vector<2x256xf32>
    %60 = tpu.matmul %57, %59, %cst_40 {dimension_numbers = #tpu.dot_dimension_numbers<[1], [0], [0], [1], [0, 0, 1, 1], [], []>} : vector<2x16xf32>, vector<16x256xf32>, vector<2x256xf32> -> vector<2x256xf32>
    %61 = arith.addf %41, %60 : vector<2x256xf32>
    %62 = vector.extract_strided_slice %5 {offsets = [20, 0], sizes = [2, 16], strides = [1, 1]} : vector<30x16xf32> to vector<2x16xf32>
    %c10 = arith.constant 10 : index
    %c0_41 = arith.constant 0 : index
    %c0_42 = arith.constant 0 : index
    %63 = vector.load %arg3[%c10, %c0_41, %c0_42] : memref<15x16x256xf32, #tpu.memory_space<vmem>>, vector<1x16x256xf32>
    %64 = vector.shape_cast %63 : vector<1x16x256xf32> to vector<16x256xf32>
    %cst_43 = arith.constant dense<0.000000e+00> : vector<2x256xf32>
    %65 = tpu.matmul %62, %64, %cst_43 {dimension_numbers = #tpu.dot_dimension_numbers<[1], [0], [0], [1], [0, 0, 1, 1], [], []>} : vector<2x16xf32>, vector<16x256xf32>, vector<2x256xf32> -> vector<2x256xf32>
    %66 = arith.addf %46, %65 : vector<2x256xf32>
    %67 = vector.extract_strided_slice %5 {offsets = [22, 0], sizes = [2, 16], strides = [1, 1]} : vector<30x16xf32> to vector<2x16xf32>
    %c11 = arith.constant 11 : index
    %c0_44 = arith.constant 0 : index
    %c0_45 = arith.constant 0 : index
    %68 = vector.load %arg3[%c11, %c0_44, %c0_45] : memref<15x16x256xf32, #tpu.memory_space<vmem>>, vector<1x16x256xf32>
    %69 = vector.shape_cast %68 : vector<1x16x256xf32> to vector<16x256xf32>
    %cst_46 = arith.constant dense<0.000000e+00> : vector<2x256xf32>
    %70 = tpu.matmul %67, %69, %cst_46 {dimension_numbers = #tpu.dot_dimension_numbers<[1], [0], [0], [1], [0, 0, 1, 1], [], []>} : vector<2x16xf32>, vector<16x256xf32>, vector<2x256xf32> -> vector<2x256xf32>
    %71 = arith.addf %51, %70 : vector<2x256xf32>
    %72 = vector.extract_strided_slice %5 {offsets = [24, 0], sizes = [2, 16], strides = [1, 1]} : vector<30x16xf32> to vector<2x16xf32>
    %c12 = arith.constant 12 : index
    %c0_47 = arith.constant 0 : index
    %c0_48 = arith.constant 0 : index
    %73 = vector.load %arg3[%c12, %c0_47, %c0_48] : memref<15x16x256xf32, #tpu.memory_space<vmem>>, vector<1x16x256xf32>
    %74 = vector.shape_cast %73 : vector<1x16x256xf32> to vector<16x256xf32>
    %cst_49 = arith.constant dense<0.000000e+00> : vector<2x256xf32>
    %75 = tpu.matmul %72, %74, %cst_49 {dimension_numbers = #tpu.dot_dimension_numbers<[1], [0], [0], [1], [0, 0, 1, 1], [], []>} : vector<2x16xf32>, vector<16x256xf32>, vector<2x256xf32> -> vector<2x256xf32>
    %76 = arith.addf %56, %75 : vector<2x256xf32>
    %77 = vector.extract_strided_slice %5 {offsets = [26, 0], sizes = [2, 16], strides = [1, 1]} : vector<30x16xf32> to vector<2x16xf32>
    %c13 = arith.constant 13 : index
    %c0_50 = arith.constant 0 : index
    %c0_51 = arith.constant 0 : index
    %78 = vector.load %arg3[%c13, %c0_50, %c0_51] : memref<15x16x256xf32, #tpu.memory_space<vmem>>, vector<1x16x256xf32>
    %79 = vector.shape_cast %78 : vector<1x16x256xf32> to vector<16x256xf32>
    %cst_52 = arith.constant dense<0.000000e+00> : vector<2x256xf32>
    %80 = tpu.matmul %77, %79, %cst_52 {dimension_numbers = #tpu.dot_dimension_numbers<[1], [0], [0], [1], [0, 0, 1, 1], [], []>} : vector<2x16xf32>, vector<16x256xf32>, vector<2x256xf32> -> vector<2x256xf32>
    %81 = arith.addf %61, %80 : vector<2x256xf32>
    %82 = vector.extract_strided_slice %5 {offsets = [28, 0], sizes = [2, 16], strides = [1, 1]} : vector<30x16xf32> to vector<2x16xf32>
    %c14 = arith.constant 14 : index
    %c0_53 = arith.constant 0 : index
    %c0_54 = arith.constant 0 : index
    %83 = vector.load %arg3[%c14, %c0_53, %c0_54] : memref<15x16x256xf32, #tpu.memory_space<vmem>>, vector<1x16x256xf32>
    %84 = vector.shape_cast %83 : vector<1x16x256xf32> to vector<16x256xf32>
    %cst_55 = arith.constant dense<0.000000e+00> : vector<2x256xf32>
    %85 = tpu.matmul %82, %84, %cst_55 {dimension_numbers = #tpu.dot_dimension_numbers<[1], [0], [0], [1], [0, 0, 1, 1], [], []>} : vector<2x16xf32>, vector<16x256xf32>, vector<2x256xf32> -> vector<2x256xf32>
    %86 = arith.addf %66, %85 : vector<2x256xf32>
    %87 = arith.addf %76, %81 : vector<2x256xf32>
    %88 = arith.addf %86, %71 : vector<2x256xf32>
    %89 = arith.addf %87, %88 : vector<2x256xf32>
    %cst_56 = arith.constant 0.000000e+00 : f32
    %90 = vector.broadcast %cst_56 : f32 to vector<2x256xf32>
    %91 = arith.maximumf %89, %90 : vector<2x256xf32>
    %c0_57 = arith.constant 0 : index
    %c0_58 = arith.constant 0 : index
    %92 = vector.load %arg5[%c0_57, %c0_58] : memref<256x128xf32, #tpu.memory_space<vmem>>, vector<256x128xf32>
    %cst_59 = arith.constant dense<0.000000e+00> : vector<2x128xf32>
    %93 = tpu.matmul %91, %92, %cst_59 {dimension_numbers = #tpu.dot_dimension_numbers<[1], [0], [0], [1], [0, 0, 1, 1], [], []>} : vector<2x256xf32>, vector<256x128xf32>, vector<2x128xf32> -> vector<2x128xf32>
    %c0_60 = arith.constant 0 : index
    %c0_61 = arith.constant 0 : index
    %94 = vector.load %arg6[%c0_60, %c0_61] : memref<1x128xf32, #tpu.memory_space<vmem>>, vector<1x128xf32>
    %95 = vector.broadcast %94 : vector<1x128xf32> to vector<2x128xf32>
    %96 = arith.addf %93, %95 : vector<2x128xf32>
    %cst_62 = arith.constant dense<0xFF800000> : vector<128xf32>
    %97 = vector.multi_reduction <maximumf>, %96, %cst_62 [0] : vector<2x128xf32> to vector<128xf32>
    %98 = vector.shape_cast %97 : vector<128xf32> to vector<1x128xf32>
    %99 = vector.broadcast %98 : vector<1x128xf32> to vector<2x128xf32>
    %100 = arith.subf %96, %99 : vector<2x128xf32>
    %101 = math.exp %100 : vector<2x128xf32>
    %cst_63 = arith.constant dense<0.000000e+00> : vector<128xf32>
    %102 = vector.multi_reduction <add>, %101, %cst_63 [0] : vector<2x128xf32> to vector<128xf32>
    %103 = vector.shape_cast %102 : vector<128xf32> to vector<1x128xf32>
    %104 = tpu.reciprocal %103 : vector<1x128xf32> -> vector<1x128xf32>
    %105 = vector.broadcast %104 : vector<1x128xf32> to vector<2x128xf32>
    %106 = arith.mulf %101, %105 : vector<2x128xf32>
    %c0_64 = arith.constant 0 : index
    %c0_65 = arith.constant 0 : index
    %107 = vector.load %arg7[%c0_64, %c0_65] : memref<2x128xf32, #tpu.memory_space<vmem>>, vector<2x128xf32>
    tpu.vector_store %arg7[%c0_64, %c0_65], %106 {strides = array<i32>} : memref<2x128xf32, #tpu.memory_space<vmem>>, vector<2x128xf32>,
    return
  }
}

</mosaic_0001>

<llo_original>
// kernel: cnn2d_forward.1
$region0: #{cnn2d_forward.1}
  #allocation0 [shape = 'u32[]', space=smem, size = 0x4, offset = 0x4, fixed_abs, tag = 'smem constant byte address 0x4 - core index']
  #allocation1 [shape = 'u32[144,128]{1,0:T(1,128)}', space=vmem, size = 0x12000, scoped, tag = 'internal scratch']
  %s0 = inlined_call_operand.vmem [shape: f32[30,25], index: 0, kind: input, shape index: {}]
  %s1 = inlined_call_operand.vmem [shape: f32[25,16], index: 1, kind: input, shape index: {}]
  %s2 = inlined_call_operand.vmem [shape: f32[1,16], index: 2, kind: input, shape index: {}]
  %s3 = inlined_call_operand.vmem [shape: f32[15,16,256], index: 3, kind: input, shape index: {}]
  %s4 = inlined_call_operand.vmem [shape: f32[1,256], index: 4, kind: input, shape index: {}]
  %s5 = inlined_call_operand.vmem [shape: f32[256,128], index: 5, kind: input, shape index: {}]
  %s6 = inlined_call_operand.vmem [shape: f32[1,128], index: 6, kind: input, shape index: {}]
  %s7 = inlined_call_operand.hbm [shape: f32[2,128], index: 7, kind: output, shape index: {}]
  %s8 = sld [smem:[#allocation0]]
  $region38: #{cnn2d_forward.1} parent=0
    _
  %s10 = ssub.s32 1, %s8
  %s11 = scalar_select 0, %s10, %s8
  $region1: #{cnn2d_forward.1} parent=0
    #allocation2 [shape = 'u8[1024]{0}', space=vmem, size = 0x400, scoped, tag = 'output window, operand 0, single buffered']
    #allocation3 [shape = 's32[1]{0}', space=sflag, size = 0x4, scoped, tag = 'scoped memory for cnn2d_forward.1']
    %12 = vsyncpa [#allocation3], 0
    // Predicated region
    $region2: #{cnn2d_forward.1} parent=1 // pred_check
      _
    $region3: #{cnn2d_forward.1} parent=1 // pred_check_branch
      %14 = sbr.rel (0) target = $region5
    $region4: #{cnn2d_forward.1} parent=1 // pred_region
      _
    $region5: #{cnn2d_forward.1} parent=1 // pred_fallthru
      _
    // Predicated region
    $region6: #{cnn2d_forward.1} parent=1 // pred_check
      _
    $region7: #{cnn2d_forward.1} parent=1 // pred_check_branch
      %16 = sbr.rel (0) target = $region9
    $region8: #{cnn2d_forward.1} parent=1 // pred_region
      _
    $region9: #{cnn2d_forward.1} parent=1 // pred_fallthru
      _
    // Predicated region
    $region10: #{cnn2d_forward.1} parent=1 // pred_check
      _
    $region11: #{cnn2d_forward.1} parent=1 // pred_check_branch
      %18 = sbr.rel (0) target = $region13
    $region12: #{cnn2d_forward.1} parent=1 // pred_region
      _
    $region13: #{cnn2d_forward.1} parent=1 // pred_fallthru
      _
    // Predicated region
    $region14: #{cnn2d_forward.1} parent=1 // pred_check
      _
    $region15: #{cnn2d_forward.1} parent=1 // pred_check_branch
      %20 = sbr.rel (0) target = $region17
    $region16: #{cnn2d_forward.1} parent=1 // pred_region
      _
    $region17: #{cnn2d_forward.1} parent=1 // pred_fallthru
      _
    // Predicated region
    $region18: #{cnn2d_forward.1} parent=1 // pred_check
      _
    $region19: #{cnn2d_forward.1} parent=1 // pred_check_branch
      %22 = sbr.rel (0) target = $region21
    $region20: #{cnn2d_forward.1} parent=1 // pred_region
      _
    $region21: #{cnn2d_forward.1} parent=1 // pred_fallthru
      _
    // Predicated region
    $region22: #{cnn2d_forward.1} parent=1 // pred_check
      _
    $region23: #{cnn2d_forward.1} parent=1 // pred_check_branch
      %24 = sbr.rel (0) target = $region25
    $region24: #{cnn2d_forward.1} parent=1 // pred_region
      _
    $region25: #{cnn2d_forward.1} parent=1 // pred_fallthru
      _
    // Predicated region
    $region26: #{cnn2d_forward.1} parent=1 // pred_check
      _
    $region27: #{cnn2d_forward.1} parent=1 // pred_check_branch
      %26 = sbr.rel (0) target = $region29
    $region28: #{cnn2d_forward.1} parent=1 // pred_region
      _
    $region29: #{cnn2d_forward.1} parent=1 // pred_fallthru
      _
    %v27 = vld [vmem:[%s0] sm:$0xff]
    %v28 = vld [vmem:[%s0 + $0x8] sm:$0xff]
    %v29 = vld [vmem:[%s0 + $0x10] sm:$0xff]
    %v30 = vld [vmem:[%s0 + $0x18] sm:$0x3f]
    %v31 = vld [vmem:[%s1] sm:$0xff]
    %v32 = vld [vmem:[%s1 + $0x8] sm:$0xff]
    %v33 = vld [vmem:[%s1 + $0x10] sm:$0xff]
    %v34 = vld [vmem:[%s1 + $0x18] sm:$0x1]
    %v35 = vld [vmem:[%s2] sm:$0x1]
    %v37 = vlaneseq
    %v38 = vshrl.u32 %v37, 7
    %v39 = vsub.s32 0, %v38
    %v40 = vrot.slane %v35, %v39
    %vm42 = vcmask 203776
    %v44 = vsel %vm42, %v27, 0
    %v47 = vsel %vm42, %v28, 0
    %v50 = vsel %vm42, %v29, 0
    %v53 = vsel %vm42, %v30, 0
    %vm55 = vcmask 1040384
    %v57 = vsel %vm55, %v34, 0
    %59 = vmatprep.subr.mxu0 0.0
    %60 = vmatpush1.msra.mxu0 %v31
    %61 = vmatprep.subr.mxu0 0.0
    %62 = vmatpush1.msra.mxu0 %v32
    %63 = vmatprep.subr.mxu0 0.0
    %64 = vmatpush1.msra.mxu0 %v33
    %65 = vmatprep.subr.mxu0 0.0
    %66 = vmatpush1.msra.mxu0 %v57
    %67 = vmatprep.subr.mxu0 0.0
    %68 = vmatpush1.msra.mxu0 0.0
    %69 = vmatprep.subr.mxu0 0.0
    %70 = vmatpush1.msra.mxu0 0.0
    %71 = vmatprep.subr.mxu0 0.0
    %72 = vmatpush1.msra.mxu0 0.0
    %73 = vmatprep.subr.mxu0 0.0
    %74 = vmatpush1.msra.mxu0 0.0
    %75 = vmatprep.subr.mxu0 0.0
    %76 = vmatpush1.msra.mxu0 0.0
    %77 = vmatprep.subr.mxu0 0.0
    %78 = vmatpush1.msra.mxu0 0.0
    %79 = vmatprep.subr.mxu0 0.0
    %80 = vmatpush1.msra.mxu0 0.0
    %81 = vmatprep.subr.mxu0 0.0
    %82 = vmatpush1.msra.mxu0 0.0
    %83 = vmatprep.subr.mxu0 0.0
    %84 = vmatpush1.msra.mxu0 0.0
    %85 = vmatprep.subr.mxu0 0.0
    %86 = vmatpush1.msra.mxu0 0.0
    %87 = vmatprep.subr.mxu0 0.0
    %88 = vmatpush1.msra.mxu0 0.0
    %89 = vmatprep.subr.mxu0 0.0
    %90 = vmatpush1.msra.mxu0 0.0
    %91 = vmatprep.subr.mxu0 0.0
    %92 = vmatpush1.msra.mxu0 0.0
    %93 = vmatprep.subr.mxu0 0.0
    %94 = vmatpush1.msra.mxu0 0.0
    %95 = vmatprep.subr.mxu0 0.0
    %96 = vmatpush1.msra.mxu0 0.0
    %97 = vmatprep.subr.mxu0 0.0
    %98 = vmatpush1.msra.mxu0 0.0
    %99 = vmatprep.subr.mxu0 0.0
    %100 = vmatpush1.msra.mxu0 0.0
    %101 = vmatprep.subr.mxu0 0.0
    %102 = vmatpush1.msra.mxu0 0.0
    %103 = vmatprep.subr.mxu0 0.0
    %104 = vmatpush1.msra.mxu0 0.0
    %105 = vmatprep.subr.mxu0 0.0
    %106 = vmatpush1.msra.mxu0 0.0
    %107 = vmatprep.subr.mxu0 0.0
    %108 = vmatpush1.msra.mxu0 0.0
    %109 = vmatprep.subr.mxu0 0.0
    %110 = vmatpush1.msra.mxu0 0.0
    %111 = vmatprep.subr.mxu0 0.0
    %112 = vmatpush1.msra.mxu0 0.0
    %113 = vmatprep.subr.mxu0 0.0
    %114 = vmatpush1.msra.mxu0 0.0
    %115 = vmatprep.subr.mxu0 0.0
    %116 = vmatpush1.msra.mxu0 0.0
    %117 = vmatprep.subr.mxu0 0.0
    %118 = vmatpush1.msra.mxu0 0.0
    %119 = vmatprep.subr.mxu0 0.0
    %120 = vmatpush1.msra.mxu0 0.0
    %121 = vmatprep.subr.mxu0 0.0
    %122 = vmatpush1.msra.mxu0 0.0
    %123 = vmatprep.mubr.f32.mxu0 0.0
    %124 = vmatmul.mubr.f32.gmra.mrb[0].mxu0 %v44
    %v125 = vpop.f32.mrb[0].mxu0
    %v126 = vadd.f32 %v40, %v125
    %v127 = vpop.f32.mrb[0].mxu0
    %128 = vmatprep.mubr.f32.mxu0 0.0
    %129 = vmatmul.mubr.f32.gmra.mrb[0].mxu0 %v47
    %v130 = vpop.f32.mrb[0].mxu0
    %v131 = vadd.f32 %v40, %v130
    %v132 = vpop.f32.mrb[0].mxu0
    %133 = vmatprep.mubr.f32.mxu0 0.0
    %134 = vmatmul.mubr.f32.gmra.mrb[0].mxu0 %v50
    %v135 = vpop.f32.mrb[0].mxu0
    %v136 = vadd.f32 %v40, %v135
    %v137 = vpop.f32.mrb[0].mxu0
    %138 = vmatprep.mubr.f32.mxu0 0.0
    %139 = vmatmul.mubr.f32.gmra.mrb[0].mxu0 %v53
    %v140 = vpop.f32.mrb[0].mxu0
    %v141 = vadd.f32 %v40, %v140
    %v142 = vpop.f32.mrb[0].mxu0
    %143 = vdwg.mxu0
    %v144 = vld [vmem:[%s4] sm:$0x3]
    %v146 = vlaneseq
    %v147 = vshrl.u32 %v146, 7
    %v148 = vsub.s32 0, %v147
    %v149 = vrot.slane %v144, %v148
    %v150 = vlaneseq
    %v151 = vshrl.u32 %v150, 7
    %v152 = vsub.s32 1, %v151
    %v153 = vrot.slane %v144, %v152
    %v156 = vld [vmem:[%s3] sm:$0xff]
    %v157 = vld [vmem:[%s3 + $0x8] sm:$0xff]
    %v158 = vld [vmem:[%s3 + $0x10] sm:$0xff]
    %v159 = vld [vmem:[%s3 + $0x18] sm:$0xff]
    %vm160 = vcmask 130048
    %v162 = vsel %vm160, %v126, 0
    %164 = vmatprep.subr.mxu0 %v157
    %165 = vmatpush1.msra.mxu0 %v156
    %166 = vmatprep.subr.mxu0 %v159
    %167 = vmatpush1.msra.mxu0 %v158
    %168 = vmatprep.subr.mxu0 0.0
    %169 = vmatpush1.msra.mxu0 0.0
    %170 = vmatprep.subr.mxu0 0.0
    %171 = vmatpush1.msra.mxu0 0.0
    %172 = vmatprep.subr.mxu0 0.0
    %173 = vmatpush1.msra.mxu0 0.0
    %174 = vmatprep.subr.mxu0 0.0
    %175 = vmatpush1.msra.mxu0 0.0
    %176 = vmatprep.subr.mxu0 0.0
    %177 = vmatpush1.msra.mxu0 0.0
    %178 = vmatprep.subr.mxu0 0.0
    %179 = vmatpush1.msra.mxu0 0.0
    %180 = vmatprep.subr.mxu0 0.0
    %181 = vmatpush1.msra.mxu0 0.0
    %182 = vmatprep.subr.mxu0 0.0
    %183 = vmatpush1.msra.mxu0 0.0
    %184 = vmatprep.subr.mxu0 0.0
    %185 = vmatpush1.msra.mxu0 0.0
    %186 = vmatprep.subr.mxu0 0.0
    %187 = vmatpush1.msra.mxu0 0.0
    %188 = vmatprep.subr.mxu0 0.0
    %189 = vmatpush1.msra.mxu0 0.0
    %190 = vmatprep.subr.mxu0 0.0
    %191 = vmatpush1.msra.mxu0 0.0
    %192 = vmatprep.subr.mxu0 0.0
    %193 = vmatpush1.msra.mxu0 0.0
    %194 = vmatprep.subr.mxu0 0.0
    %195 = vmatpush1.msra.mxu0 0.0
    %196 = vmatprep.subr.mxu0 0.0
    %197 = vmatpush1.msra.mxu0 0.0
    %198 = vmatprep.subr.mxu0 0.0
    %199 = vmatpush1.msra.mxu0 0.0
    %200 = vmatprep.subr.mxu0 0.0
    %201 = vmatpush1.msra.mxu0 0.0
    %202 = vmatprep.subr.mxu0 0.0
    %203 = vmatpush1.msra.mxu0 0.0
    %204 = vmatprep.subr.mxu0 0.0
    %205 = vmatpush1.msra.mxu0 0.0
    %206 = vmatprep.subr.mxu0 0.0
    %207 = vmatpush1.msra.mxu0 0.0
    %208 = vmatprep.subr.mxu0 0.0
    %209 = vmatpush1.msra.mxu0 0.0
    %210 = vmatprep.subr.mxu0 0.0
    %211 = vmatpush1.msra.mxu0 0.0
    %212 = vmatprep.subr.mxu0 0.0
    %213 = vmatpush1.msra.mxu0 0.0
    %214 = vmatprep.subr.mxu0 0.0
    %215 = vmatpush1.msra.mxu0 0.0
    %216 = vmatprep.subr.mxu0 0.0
    %217 = vmatpush1.msra.mxu0 0.0
    %218 = vmatprep.subr.mxu0 0.0
    %219 = vmatpush1.msra.mxu0 0.0
    %220 = vmatprep.subr.mxu0 0.0
    %221 = vmatpush1.msra.mxu0 0.0
    %222 = vmatprep.subr.mxu0 0.0
    %223 = vmatpush1.msra.mxu0 0.0
    %224 = vmatprep.subr.mxu0 0.0
    %225 = vmatpush1.msra.mxu0 0.0
    %226 = vmatprep.subr.mxu0 0.0
    %227 = vmatpush1.msra.mxu0 0.0
    %228 = vmatprep.mubr.f32.mxu0 0.0
    %229 = vmatmul.mubr.f32.gmra.mrb[0].mxu0 %v162
    %v230 = vpop.f32.mrb[0].mxu0
    %v231 = vadd.f32 0.0, %v230
    %v232 = vpop.f32.mrb[0].mxu0
    %v233 = vadd.f32 0.0, %v232
    %234 = vdwg.mxu0
    %v235 = vadd.f32 %v149, %v231
    %v236 = vadd.f32 %v153, %v233
    %s237 = scalar_lea.vmem %s3, 32
    %v238 = vld [vmem:[%s237] sm:$0xff]
    %v239 = vld [vmem:[%s237 + $0x8] sm:$0xff]
    %v240 = vld [vmem:[%s237 + $0x10] sm:$0xff]
    %v241 = vld [vmem:[%s237 + $0x18] sm:$0xff]
    %s242 = scalar_lea.vmem %s3, 64
    %v243 = vld [vmem:[%s242] sm:$0xff]
    %v244 = vld [vmem:[%s242 + $0x8] sm:$0xff]
    %v245 = vld [vmem:[%s242 + $0x10] sm:$0xff]
    %v246 = vld [vmem:[%s242 + $0x18] sm:$0xff]
    %s247 = scalar_lea.vmem %s3, 96
    %v248 = vld [vmem:[%s247] sm:$0xff]
    %v249 = vld [vmem:[%s247 + $0x8] sm:$0xff]
    %v250 = vld [vmem:[%s247 + $0x10] sm:$0xff]
    %v251 = vld [vmem:[%s247 + $0x18] sm:$0xff]
    %s252 = scalar_lea.vmem %s3, 128
    %v253 = vld [vmem:[%s252] sm:$0xff]
    %v254 = vld [vmem:[%s252 + $0x8] sm:$0xff]
    %v255 = vld [vmem:[%s252 + $0x10] sm:$0xff]
    %v256 = vld [vmem:[%s252 + $0x18] sm:$0xff]
    %v258 = vsel %vm160, %v131, 0
    %260 = vmatprep.subr.mxu0 %v254
    %261 = vmatpush1.msra.mxu0 %v253
    %262 = vmatprep.subr.mxu0 %v256
    %263 = vmatpush1.msra.mxu0 %v255
    %264 = vmatprep.subr.mxu0 0.0
    %265 = vmatpush1.msra.mxu0 0.0
    %266 = vmatprep.subr.mxu0 0.0
    %267 = vmatpush1.msra.mxu0 0.0
    %268 = vmatprep.subr.mxu0 0.0
    %269 = vmatpush1.msra.mxu0 0.0
    %270 = vmatprep.subr.mxu0 0.0
    %271 = vmatpush1.msra.mxu0 0.0
    %272 = vmatprep.subr.mxu0 0.0
    %273 = vmatpush1.msra.mxu0 0.0
    %274 = vmatprep.subr.mxu0 0.0
    %275 = vmatpush1.msra.mxu0 0.0
    %276 = vmatprep.subr.mxu0 0.0
    %277 = vmatpush1.msra.mxu0 0.0
    %278 = vmatprep.subr.mxu0 0.0
    %279 = vmatpush1.msra.mxu0 0.0
    %280 = vmatprep.subr.mxu0 0.0
    %281 = vmatpush1.msra.mxu0 0.0
    %282 = vmatprep.subr.mxu0 0.0
    %283 = vmatpush1.msra.mxu0 0.0
    %284 = vmatprep.subr.mxu0 0.0
    %285 = vmatpush1.msra.mxu0 0.0
    %286 = vmatprep.subr.mxu0 0.0
    %287 = vmatpush1.msra.mxu0 0.0
    %288 = vmatprep.subr.mxu0 0.0
    %289 = vmatpush1.msra.mxu0 0.0
    %290 = vmatprep.subr.mxu0 0.0
    %291 = vmatpush1.msra.mxu0 0.0
    %292 = vmatprep.subr.mxu0 0.0
    %293 = vmatpush1.msra.mxu0 0.0
    %294 = vmatprep.subr.mxu0 0.0
    %295 = vmatpush1.msra.mxu0 0.0
    %296 = vmatprep.subr.mxu0 0.0
    %297 = vmatpush1.msra.mxu0 0.0
    %298 = vmatprep.subr.mxu0 0.0
    %299 = vmatpush1.msra.mxu0 0.0
    %300 = vmatprep.subr.mxu0 0.0
    %301 = vmatpush1.msra.mxu0 0.0
    %302 = vmatprep.subr.mxu0 0.0
    %303 = vmatpush1.msra.mxu0 0.0
    %304 = vmatprep.subr.mxu0 0.0
    %305 = vmatpush1.msra.mxu0 0.0
    %306 = vmatprep.subr.mxu0 0.0
    %307 = vmatpush1.msra.mxu0 0.0
    %308 = vmatprep.subr.mxu0 0.0
    %309 = vmatpush1.msra.mxu0 0.0
    %310 = vmatprep.subr.mxu0 0.0
    %311 = vmatpush1.msra.mxu0 0.0
    %312 = vmatprep.subr.mxu0 0.0
    %313 = vmatpush1.msra.mxu0 0.0
    %314 = vmatprep.subr.mxu0 0.0
    %315 = vmatpush1.msra.mxu0 0.0
    %316 = vmatprep.subr.mxu0 0.0
    %317 = vmatpush1.msra.mxu0 0.0
    %318 = vmatprep.subr.mxu0 0.0
    %319 = vmatpush1.msra.mxu0 0.0
    %320 = vmatprep.subr.mxu0 0.0
    %321 = vmatpush1.msra.mxu0 0.0
    %322 = vmatprep.subr.mxu0 0.0
    %323 = vmatpush1.msra.mxu0 0.0
    %324 = vmatprep.mubr.f32.mxu0 0.0
    %325 = vmatmul.mubr.f32.gmra.mrb[0].mxu0 %v258
    %v326 = vpop.f32.mrb[0].mxu0
    %v327 = vadd.f32 0.0, %v326
    %v328 = vpop.f32.mrb[0].mxu0
    %v329 = vadd.f32 0.0, %v328
    %330 = vdwg.mxu0
    %v331 = vadd.f32 %v235, %v327
    %v332 = vadd.f32 %v236, %v329
    %s333 = scalar_lea.vmem %s3, 160
    %v334 = vld [vmem:[%s333] sm:$0xff]
    %v335 = vld [vmem:[%s333 + $0x8] sm:$0xff]
    %v336 = vld [vmem:[%s333 + $0x10] sm:$0xff]
    %v337 = vld [vmem:[%s333 + $0x18] sm:$0xff]
    %v338 = vrot.slane %v131, 2
    %v339 = vsel %vm160, %v338, 0
    %341 = vmatprep.subr.mxu0 %v335
    %342 = vmatpush1.msra.mxu0 %v334
    %343 = vmatprep.subr.mxu0 %v337
    %344 = vmatpush1.msra.mxu0 %v336
    %345 = vmatprep.subr.mxu0 0.0
    %346 = vmatpush1.msra.mxu0 0.0
    %347 = vmatprep.subr.mxu0 0.0
    %348 = vmatpush1.msra.mxu0 0.0
    %349 = vmatprep.subr.mxu0 0.0
    %350 = vmatpush1.msra.mxu0 0.0
    %351 = vmatprep.subr.mxu0 0.0
    %352 = vmatpush1.msra.mxu0 0.0
    %353 = vmatprep.subr.mxu0 0.0
    %354 = vmatpush1.msra.mxu0 0.0
    %355 = vmatprep.subr.mxu0 0.0
    %356 = vmatpush1.msra.mxu0 0.0
    %357 = vmatprep.subr.mxu0 0.0
    %358 = vmatpush1.msra.mxu0 0.0
    %359 = vmatprep.subr.mxu0 0.0
    %360 = vmatpush1.msra.mxu0 0.0
    %361 = vmatprep.subr.mxu0 0.0
    %362 = vmatpush1.msra.mxu0 0.0
    %363 = vmatprep.subr.mxu0 0.0
    %364 = vmatpush1.msra.mxu0 0.0
    %365 = vmatprep.subr.mxu0 0.0
    %366 = vmatpush1.msra.mxu0 0.0
    %367 = vmatprep.subr.mxu0 0.0
    %368 = vmatpush1.msra.mxu0 0.0
    %369 = vmatprep.subr.mxu0 0.0
    %370 = vmatpush1.msra.mxu0 0.0
    %371 = vmatprep.subr.mxu0 0.0
    %372 = vmatpush1.msra.mxu0 0.0
    %373 = vmatprep.subr.mxu0 0.0
    %374 = vmatpush1.msra.mxu0 0.0
    %375 = vmatprep.subr.mxu0 0.0
    %376 = vmatpush1.msra.mxu0 0.0
    %377 = vmatprep.subr.mxu0 0.0
    %378 = vmatpush1.msra.mxu0 0.0
    %379 = vmatprep.subr.mxu0 0.0
    %380 = vmatpush1.msra.mxu0 0.0
    %381 = vmatprep.subr.mxu0 0.0
    %382 = vmatpush1.msra.mxu0 0.0
    %383 = vmatprep.subr.mxu0 0.0
    %384 = vmatpush1.msra.mxu0 0.0
    %385 = vmatprep.subr.mxu0 0.0
    %386 = vmatpush1.msra.mxu0 0.0
    %387 = vmatprep.subr.mxu0 0.0
    %388 = vmatpush1.msra.mxu0 0.0
    %389 = vmatprep.subr.mxu0 0.0
    %390 = vmatpush1.msra.mxu0 0.0
    %391 = vmatprep.subr.mxu0 0.0
    %392 = vmatpush1.msra.mxu0 0.0
    %393 = vmatprep.subr.mxu0 0.0
    %394 = vmatpush1.msra.mxu0 0.0
    %395 = vmatprep.subr.mxu0 0.0
    %396 = vmatpush1.msra.mxu0 0.0
    %397 = vmatprep.subr.mxu0 0.0
    %398 = vmatpush1.msra.mxu0 0.0
    %399 = vmatprep.subr.mxu0 0.0
    %400 = vmatpush1.msra.mxu0 0.0
    %401 = vmatprep.subr.mxu0 0.0
    %402 = vmatpush1.msra.mxu0 0.0
    %403 = vmatprep.subr.mxu0 0.0
    %404 = vmatpush1.msra.mxu0 0.0
    %405 = vmatprep.mubr.f32.mxu0 0.0
    %406 = vmatmul.mubr.f32.gmra.mrb[0].mxu0 %v339
    %v407 = vpop.f32.mrb[0].mxu0
    %v408 = vadd.f32 0.0, %v407
    %v409 = vpop.f32.mrb[0].mxu0
    %v410 = vadd.f32 0.0, %v409
    %411 = vdwg.mxu0
    %v412 = vrot.slane %v126, 2
    %v413 = vsel %vm160, %v412, 0
    %415 = vmatprep.subr.mxu0 %v239
    %416 = vmatpush1.msra.mxu0 %v238
    %417 = vmatprep.subr.mxu0 %v241
    %418 = vmatpush1.msra.mxu0 %v240
    %419 = vmatprep.subr.mxu0 0.0
    %420 = vmatpush1.msra.mxu0 0.0
    %421 = vmatprep.subr.mxu0 0.0
    %422 = vmatpush1.msra.mxu0 0.0
    %423 = vmatprep.subr.mxu0 0.0
    %424 = vmatpush1.msra.mxu0 0.0
    %425 = vmatprep.subr.mxu0 0.0
    %426 = vmatpush1.msra.mxu0 0.0
    %427 = vmatprep.subr.mxu0 0.0
    %428 = vmatpush1.msra.mxu0 0.0
    %429 = vmatprep.subr.mxu0 0.0
    %430 = vmatpush1.msra.mxu0 0.0
    %431 = vmatprep.subr.mxu0 0.0
    %432 = vmatpush1.msra.mxu0 0.0
    %433 = vmatprep.subr.mxu0 0.0
    %434 = vmatpush1.msra.mxu0 0.0
    %435 = vmatprep.subr.mxu0 0.0
    %436 = vmatpush1.msra.mxu0 0.0
    %437 = vmatprep.subr.mxu0 0.0
    %438 = vmatpush1.msra.mxu0 0.0
    %439 = vmatprep.subr.mxu0 0.0
    %440 = vmatpush1.msra.mxu0 0.0
    %441 = vmatprep.subr.mxu0 0.0
    %442 = vmatpush1.msra.mxu0 0.0
    %443 = vmatprep.subr.mxu0 0.0
    %444 = vmatpush1.msra.mxu0 0.0
    %445 = vmatprep.subr.mxu0 0.0
    %446 = vmatpush1.msra.mxu0 0.0
    %447 = vmatprep.subr.mxu0 0.0
    %448 = vmatpush1.msra.mxu0 0.0
    %449 = vmatprep.subr.mxu0 0.0
    %450 = vmatpush1.msra.mxu0 0.0
    %451 = vmatprep.subr.mxu0 0.0
    %452 = vmatpush1.msra.mxu0 0.0
    %453 = vmatprep.subr.mxu0 0.0
    %454 = vmatpush1.msra.mxu0 0.0
    %455 = vmatprep.subr.mxu0 0.0
    %456 = vmatpush1.msra.mxu0 0.0
    %457 = vmatprep.subr.mxu0 0.0
    %458 = vmatpush1.msra.mxu0 0.0
    %459 = vmatprep.subr.mxu0 0.0
    %460 = vmatpush1.msra.mxu0 0.0
    %461 = vmatprep.subr.mxu0 0.0
    %462 = vmatpush1.msra.mxu0 0.0
    %463 = vmatprep.subr.mxu0 0.0
    %464 = vmatpush1.msra.mxu0 0.0
    %465 = vmatprep.subr.mxu0 0.0
    %466 = vmatpush1.msra.mxu0 0.0
    %467 = vmatprep.subr.mxu0 0.0
    %468 = vmatpush1.msra.mxu0 0.0
    %469 = vmatprep.subr.mxu0 0.0
    %470 = vmatpush1.msra.mxu0 0.0
    %471 = vmatprep.subr.mxu0 0.0
    %472 = vmatpush1.msra.mxu0 0.0
    %473 = vmatprep.subr.mxu0 0.0
    %474 = vmatpush1.msra.mxu0 0.0
    %475 = vmatprep.subr.mxu0 0.0
    %476 = vmatpush1.msra.mxu0 0.0
    %477 = vmatprep.subr.mxu0 0.0
    %478 = vmatpush1.msra.mxu0 0.0
    %479 = vmatprep.mubr.f32.mxu0 0.0
    %480 = vmatmul.mubr.f32.gmra.mrb[0].mxu0 %v413
    %v481 = vpop.f32.mrb[0].mxu0
    %v482 = vadd.f32 %v408, %v481
    %v483 = vpop.f32.mrb[0].mxu0
    %v484 = vadd.f32 %v410, %v483
    %485 = vdwg.mxu0
    %s486 = scalar_lea.vmem %s3, 192
    %v487 = vld [vmem:[%s486] sm:$0xff]
    %v488 = vld [vmem:[%s486 + $0x8] sm:$0xff]
    %v489 = vld [vmem:[%s486 + $0x10] sm:$0xff]
    %v490 = vld [vmem:[%s486 + $0x18] sm:$0xff]
    %v491 = vrot.slane %v131, 4
    %v492 = vsel %vm160, %v491, 0
    %494 = vmatprep.subr.mxu0 %v488
    %495 = vmatpush1.msra.mxu0 %v487
    %496 = vmatprep.subr.mxu0 %v490
    %497 = vmatpush1.msra.mxu0 %v489
    %498 = vmatprep.subr.mxu0 0.0
    %499 = vmatpush1.msra.mxu0 0.0
    %500 = vmatprep.subr.mxu0 0.0
    %501 = vmatpush1.msra.mxu0 0.0
    %502 = vmatprep.subr.mxu0 0.0
    %503 = vmatpush1.msra.mxu0 0.0
    %504 = vmatprep.subr.mxu0 0.0
    %505 = vmatpush1.msra.mxu0 0.0
    %506 = vmatprep.subr.mxu0 0.0
    %507 = vmatpush1.msra.mxu0 0.0
    %508 = vmatprep.subr.mxu0 0.0
    %509 = vmatpush1.msra.mxu0 0.0
    %510 = vmatprep.subr.mxu0 0.0
    %511 = vmatpush1.msra.mxu0 0.0
    %512 = vmatprep.subr.mxu0 0.0
    %513 = vmatpush1.msra.mxu0 0.0
    %514 = vmatprep.subr.mxu0 0.0
    %515 = vmatpush1.msra.mxu0 0.0
    %516 = vmatprep.subr.mxu0 0.0
    %517 = vmatpush1.msra.mxu0 0.0
    %518 = vmatprep.subr.mxu0 0.0
    %519 = vmatpush1.msra.mxu0 0.0
    %520 = vmatprep.subr.mxu0 0.0
    %521 = vmatpush1.msra.mxu0 0.0
    %522 = vmatprep.subr.mxu0 0.0
    %523 = vmatpush1.msra.mxu0 0.0
    %524 = vmatprep.subr.mxu0 0.0
    %525 = vmatpush1.msra.mxu0 0.0
    %526 = vmatprep.subr.mxu0 0.0
    %527 = vmatpush1.msra.mxu0 0.0
    %528 = vmatprep.subr.mxu0 0.0
    %529 = vmatpush1.msra.mxu0 0.0
    %530 = vmatprep.subr.mxu0 0.0
    %531 = vmatpush1.msra.mxu0 0.0
    %532 = vmatprep.subr.mxu0 0.0
    %533 = vmatpush1.msra.mxu0 0.0
    %534 = vmatprep.subr.mxu0 0.0
    %535 = vmatpush1.msra.mxu0 0.0
    %536 = vmatprep.subr.mxu0 0.0
    %537 = vmatpush1.msra.mxu0 0.0
    %538 = vmatprep.subr.mxu0 0.0
    %539 = vmatpush1.msra.mxu0 0.0
    %540 = vmatprep.subr.mxu0 0.0
    %541 = vmatpush1.msra.mxu0 0.0
    %542 = vmatprep.subr.mxu0 0.0
    %543 = vmatpush1.msra.mxu0 0.0
    %544 = vmatprep.subr.mxu0 0.0
    %545 = vmatpush1.msra.mxu0 0.0
    %546 = vmatprep.subr.mxu0 0.0
    %547 = vmatpush1.msra.mxu0 0.0
    %548 = vmatprep.subr.mxu0 0.0
    %549 = vmatpush1.msra.mxu0 0.0
    %550 = vmatprep.subr.mxu0 0.0
    %551 = vmatpush1.msra.mxu0 0.0
    %552 = vmatprep.subr.mxu0 0.0
    %553 = vmatpush1.msra.mxu0 0.0
    %554 = vmatprep.subr.mxu0 0.0
    %555 = vmatpush1.msra.mxu0 0.0
    %556 = vmatprep.subr.mxu0 0.0
    %557 = vmatpush1.msra.mxu0 0.0
    %558 = vmatprep.mubr.f32.mxu0 0.0
    %559 = vmatmul.mubr.f32.gmra.mrb[0].mxu0 %v492
    %v560 = vpop.f32.mrb[0].mxu0
    %v561 = vadd.f32 0.0, %v560
    %v562 = vpop.f32.mrb[0].mxu0
    %v563 = vadd.f32 0.0, %v562
    %564 = vdwg.mxu0
    %v565 = vrot.slane %v126, 4
    %v566 = vsel %vm160, %v565, 0
    %568 = vmatprep.subr.mxu0 %v244
    %569 = vmatpush1.msra.mxu0 %v243
    %570 = vmatprep.subr.mxu0 %v246
    %571 = vmatpush1.msra.mxu0 %v245
    %572 = vmatprep.subr.mxu0 0.0
    %573 = vmatpush1.msra.mxu0 0.0
    %574 = vmatprep.subr.mxu0 0.0
    %575 = vmatpush1.msra.mxu0 0.0
    %576 = vmatprep.subr.mxu0 0.0
    %577 = vmatpush1.msra.mxu0 0.0
    %578 = vmatprep.subr.mxu0 0.0
    %579 = vmatpush1.msra.mxu0 0.0
    %580 = vmatprep.subr.mxu0 0.0
    %581 = vmatpush1.msra.mxu0 0.0
    %582 = vmatprep.subr.mxu0 0.0
    %583 = vmatpush1.msra.mxu0 0.0
    %584 = vmatprep.subr.mxu0 0.0
    %585 = vmatpush1.msra.mxu0 0.0
    %586 = vmatprep.subr.mxu0 0.0
    %587 = vmatpush1.msra.mxu0 0.0
    %588 = vmatprep.subr.mxu0 0.0
    %589 = vmatpush1.msra.mxu0 0.0
    %590 = vmatprep.subr.mxu0 0.0
    %591 = vmatpush1.msra.mxu0 0.0
    %592 = vmatprep.subr.mxu0 0.0
    %593 = vmatpush1.msra.mxu0 0.0
    %594 = vmatprep.subr.mxu0 0.0
    %595 = vmatpush1.msra.mxu0 0.0
    %596 = vmatprep.subr.mxu0 0.0
    %597 = vmatpush1.msra.mxu0 0.0
    %598 = vmatprep.subr.mxu0 0.0
    %599 = vmatpush1.msra.mxu0 0.0
    %600 = vmatprep.subr.mxu0 0.0
    %601 = vmatpush1.msra.mxu0 0.0
    %602 = vmatprep.subr.mxu0 0.0
    %603 = vmatpush1.msra.mxu0 0.0
    %604 = vmatprep.subr.mxu0 0.0
    %605 = vmatpush1.msra.mxu0 0.0
    %606 = vmatprep.subr.mxu0 0.0
    %607 = vmatpush1.msra.mxu0 0.0
    %608 = vmatprep.subr.mxu0 0.0
    %609 = vmatpush1.msra.mxu0 0.0
    %610 = vmatprep.subr.mxu0 0.0
    %611 = vmatpush1.msra.mxu0 0.0
    %612 = vmatprep.subr.mxu0 0.0
    %613 = vmatpush1.msra.mxu0 0.0
    %614 = vmatprep.subr.mxu0 0.0
    %615 = vmatpush1.msra.mxu0 0.0
    %616 = vmatprep.subr.mxu0 0.0
    %617 = vmatpush1.msra.mxu0 0.0
    %618 = vmatprep.subr.mxu0 0.0
    %619 = vmatpush1.msra.mxu0 0.0
    %620 = vmatprep.subr.mxu0 0.0
    %621 = vmatpush1.msra.mxu0 0.0
    %622 = vmatprep.subr.mxu0 0.0
    %623 = vmatpush1.msra.mxu0 0.0
    %624 = vmatprep.subr.mxu0 0.0
    %625 = vmatpush1.msra.mxu0 0.0
    %626 = vmatprep.subr.mxu0 0.0
    %627 = vmatpush1.msra.mxu0 0.0
    %628 = vmatprep.subr.mxu0 0.0
    %629 = vmatpush1.msra.mxu0 0.0
    %630 = vmatprep.subr.mxu0 0.0
    %631 = vmatpush1.msra.mxu0 0.0
    %632 = vmatprep.mubr.f32.mxu0 0.0
    %633 = vmatmul.mubr.f32.gmra.mrb[0].mxu0 %v566
    %v634 = vpop.f32.mrb[0].mxu0
    %v635 = vadd.f32 %v561, %v634
    %v636 = vpop.f32.mrb[0].mxu0
    %v637 = vadd.f32 %v563, %v636
    %638 = vdwg.mxu0
    %s639 = scalar_lea.vmem %s3, 224
    %v640 = vld [vmem:[%s639] sm:$0xff]
    %v641 = vld [vmem:[%s639 + $0x8] sm:$0xff]
    %v642 = vld [vmem:[%s639 + $0x10] sm:$0xff]
    %v643 = vld [vmem:[%s639 + $0x18] sm:$0xff]
    %v644 = vrot.slane %v131, 6
    %v645 = vsel %vm160, %v644, 0
    %647 = vmatprep.subr.mxu0 %v641
    %648 = vmatpush1.msra.mxu0 %v640
    %649 = vmatprep.subr.mxu0 %v643
    %650 = vmatpush1.msra.mxu0 %v642
    %651 = vmatprep.subr.mxu0 0.0
    %652 = vmatpush1.msra.mxu0 0.0
    %653 = vmatprep.subr.mxu0 0.0
    %654 = vmatpush1.msra.mxu0 0.0
    %655 = vmatprep.subr.mxu0 0.0
    %656 = vmatpush1.msra.mxu0 0.0
    %657 = vmatprep.subr.mxu0 0.0
    %658 = vmatpush1.msra.mxu0 0.0
    %659 = vmatprep.subr.mxu0 0.0
    %660 = vmatpush1.msra.mxu0 0.0
    %661 = vmatprep.subr.mxu0 0.0
    %662 = vmatpush1.msra.mxu0 0.0
    %663 = vmatprep.subr.mxu0 0.0
    %664 = vmatpush1.msra.mxu0 0.0
    %665 = vmatprep.subr.mxu0 0.0
    %666 = vmatpush1.msra.mxu0 0.0
    %667 = vmatprep.subr.mxu0 0.0
    %668 = vmatpush1.msra.mxu0 0.0
    %669 = vmatprep.subr.mxu0 0.0
    %670 = vmatpush1.msra.mxu0 0.0
    %671 = vmatprep.subr.mxu0 0.0
    %672 = vmatpush1.msra.mxu0 0.0
    %673 = vmatprep.subr.mxu0 0.0
    %674 = vmatpush1.msra.mxu0 0.0
    %675 = vmatprep.subr.mxu0 0.0
    %676 = vmatpush1.msra.mxu0 0.0
    %677 = vmatprep.subr.mxu0 0.0
    %678 = vmatpush1.msra.mxu0 0.0
    %679 = vmatprep.subr.mxu0 0.0
    %680 = vmatpush1.msra.mxu0 0.0
    %681 = vmatprep.subr.mxu0 0.0
    %682 = vmatpush1.msra.mxu0 0.0
    %683 = vmatprep.subr.mxu0 0.0
    %684 = vmatpush1.msra.mxu0 0.0
    %685 = vmatprep.subr.mxu0 0.0
    %686 = vmatpush1.msra.mxu0 0.0
    %687 = vmatprep.subr.mxu0 0.0
    %688 = vmatpush1.msra.mxu0 0.0
    %689 = vmatprep.subr.mxu0 0.0
    %690 = vmatpush1.msra.mxu0 0.0
    %691 = vmatprep.subr.mxu0 0.0
    %692 = vmatpush1.msra.mxu0 0.0
    %693 = vmatprep.subr.mxu0 0.0
    %694 = vmatpush1.msra.mxu0 0.0
    %695 = vmatprep.subr.mxu0 0.0
    %696 = vmatpush1.msra.mxu0 0.0
    %697 = vmatprep.subr.mxu0 0.0
    %698 = vmatpush1.msra.mxu0 0.0
    %699 = vmatprep.subr.mxu0 0.0
    %700 = vmatpush1.msra.mxu0 0.0
    %701 = vmatprep.subr.mxu0 0.0
    %702 = vmatpush1.msra.mxu0 0.0
    %703 = vmatprep.subr.mxu0 0.0
    %704 = vmatpush1.msra.mxu0 0.0
    %705 = vmatprep.subr.mxu0 0.0
    %706 = vmatpush1.msra.mxu0 0.0
    %707 = vmatprep.subr.mxu0 0.0
    %708 = vmatpush1.msra.mxu0 0.0
    %709 = vmatprep.subr.mxu0 0.0
    %710 = vmatpush1.msra.mxu0 0.0
    %711 = vmatprep.mubr.f32.mxu0 0.0
    %712 = vmatmul.mubr.f32.gmra.mrb[0].mxu0 %v645
    %v713 = vpop.f32.mrb[0].mxu0
    %v714 = vadd.f32 0.0, %v713
    %v715 = vpop.f32.mrb[0].mxu0
    %v716 = vadd.f32 0.0, %v715
    %717 = vdwg.mxu0
    %v718 = vrot.slane %v126, 6
    %v719 = vsel %vm160, %v718, 0
    %721 = vmatprep.subr.mxu0 %v249
    %722 = vmatpush1.msra.mxu0 %v248
    %723 = vmatprep.subr.mxu0 %v251
    %724 = vmatpush1.msra.mxu0 %v250
    %725 = vmatprep.subr.mxu0 0.0
    %726 = vmatpush1.msra.mxu0 0.0
    %727 = vmatprep.subr.mxu0 0.0
    %728 = vmatpush1.msra.mxu0 0.0
    %729 = vmatprep.subr.mxu0 0.0
    %730 = vmatpush1.msra.mxu0 0.0
    %731 = vmatprep.subr.mxu0 0.0
    %732 = vmatpush1.msra.mxu0 0.0
    %733 = vmatprep.subr.mxu0 0.0
    %734 = vmatpush1.msra.mxu0 0.0
    %735 = vmatprep.subr.mxu0 0.0
    %736 = vmatpush1.msra.mxu0 0.0
    %737 = vmatprep.subr.mxu0 0.0
    %738 = vmatpush1.msra.mxu0 0.0
    %739 = vmatprep.subr.mxu0 0.0
    %740 = vmatpush1.msra.mxu0 0.0
    %741 = vmatprep.subr.mxu0 0.0
    %742 = vmatpush1.msra.mxu0 0.0
    %743 = vmatprep.subr.mxu0 0.0
    %744 = vmatpush1.msra.mxu0 0.0
    %745 = vmatprep.subr.mxu0 0.0
    %746 = vmatpush1.msra.mxu0 0.0
    %747 = vmatprep.subr.mxu0 0.0
    %748 = vmatpush1.msra.mxu0 0.0
    %749 = vmatprep.subr.mxu0 0.0
    %750 = vmatpush1.msra.mxu0 0.0
    %751 = vmatprep.subr.mxu0 0.0
    %752 = vmatpush1.msra.mxu0 0.0
    %753 = vmatprep.subr.mxu0 0.0
    %754 = vmatpush1.msra.mxu0 0.0
    %755 = vmatprep.subr.mxu0 0.0
    %756 = vmatpush1.msra.mxu0 0.0
    %757 = vmatprep.subr.mxu0 0.0
    %758 = vmatpush1.msra.mxu0 0.0
    %759 = vmatprep.subr.mxu0 0.0
    %760 = vmatpush1.msra.mxu0 0.0
    %761 = vmatprep.subr.mxu0 0.0
    %762 = vmatpush1.msra.mxu0 0.0
    %763 = vmatprep.subr.mxu0 0.0
    %764 = vmatpush1.msra.mxu0 0.0
    %765 = vmatprep.subr.mxu0 0.0
    %766 = vmatpush1.msra.mxu0 0.0
    %767 = vmatprep.subr.mxu0 0.0
    %768 = vmatpush1.msra.mxu0 0.0
    %769 = vmatprep.subr.mxu0 0.0
    %770 = vmatpush1.msra.mxu0 0.0
    %771 = vmatprep.subr.mxu0 0.0
    %772 = vmatpush1.msra.mxu0 0.0
    %773 = vmatprep.subr.mxu0 0.0
    %774 = vmatpush1.msra.mxu0 0.0
    %775 = vmatprep.subr.mxu0 0.0
    %776 = vmatpush1.msra.mxu0 0.0
    %777 = vmatprep.subr.mxu0 0.0
    %778 = vmatpush1.msra.mxu0 0.0
    %779 = vmatprep.subr.mxu0 0.0
    %780 = vmatpush1.msra.mxu0 0.0
    %781 = vmatprep.subr.mxu0 0.0
    %782 = vmatpush1.msra.mxu0 0.0
    %783 = vmatprep.subr.mxu0 0.0
    %784 = vmatpush1.msra.mxu0 0.0
    %785 = vmatprep.mubr.f32.mxu0 0.0
    %786 = vmatmul.mubr.f32.gmra.mrb[0].mxu0 %v719
    %v787 = vpop.f32.mrb[0].mxu0
    %v788 = vadd.f32 %v714, %v787
    %v789 = vpop.f32.mrb[0].mxu0
    %v790 = vadd.f32 %v716, %v789
    %791 = vdwg.mxu0
    %s792 = scalar_lea.vmem %s3, 256
    %v793 = vld [vmem:[%s792] sm:$0xff]
    %v794 = vld [vmem:[%s792 + $0x8] sm:$0xff]
    %v795 = vld [vmem:[%s792 + $0x10] sm:$0xff]
    %v796 = vld [vmem:[%s792 + $0x18] sm:$0xff]
    %v798 = vsel %vm160, %v136, 0
    %800 = vmatprep.subr.mxu0 %v794
    %801 = vmatpush1.msra.mxu0 %v793
    %802 = vmatprep.subr.mxu0 %v796
    %803 = vmatpush1.msra.mxu0 %v795
    %804 = vmatprep.subr.mxu0 0.0
    %805 = vmatpush1.msra.mxu0 0.0
    %806 = vmatprep.subr.mxu0 0.0
    %807 = vmatpush1.msra.mxu0 0.0
    %808 = vmatprep.subr.mxu0 0.0
    %809 = vmatpush1.msra.mxu0 0.0
    %810 = vmatprep.subr.mxu0 0.0
    %811 = vmatpush1.msra.mxu0 0.0
    %812 = vmatprep.subr.mxu0 0.0
    %813 = vmatpush1.msra.mxu0 0.0
    %814 = vmatprep.subr.mxu0 0.0
    %815 = vmatpush1.msra.mxu0 0.0
    %816 = vmatprep.subr.mxu0 0.0
    %817 = vmatpush1.msra.mxu0 0.0
    %818 = vmatprep.subr.mxu0 0.0
    %819 = vmatpush1.msra.mxu0 0.0
    %820 = vmatprep.subr.mxu0 0.0
    %821 = vmatpush1.msra.mxu0 0.0
    %822 = vmatprep.subr.mxu0 0.0
    %823 = vmatpush1.msra.mxu0 0.0
    %824 = vmatprep.subr.mxu0 0.0
    %825 = vmatpush1.msra.mxu0 0.0
    %826 = vmatprep.subr.mxu0 0.0
    %827 = vmatpush1.msra.mxu0 0.0
    %828 = vmatprep.subr.mxu0 0.0
    %829 = vmatpush1.msra.mxu0 0.0
    %830 = vmatprep.subr.mxu0 0.0
    %831 = vmatpush1.msra.mxu0 0.0
    %832 = vmatprep.subr.mxu0 0.0
    %833 = vmatpush1.msra.mxu0 0.0
    %834 = vmatprep.subr.mxu0 0.0
    %835 = vmatpush1.msra.mxu0 0.0
    %836 = vmatprep.subr.mxu0 0.0
    %837 = vmatpush1.msra.mxu0 0.0
    %838 = vmatprep.subr.mxu0 0.0
    %839 = vmatpush1.msra.mxu0 0.0
    %840 = vmatprep.subr.mxu0 0.0
    %841 = vmatpush1.msra.mxu0 0.0
    %842 = vmatprep.subr.mxu0 0.0
    %843 = vmatpush1.msra.mxu0 0.0
    %844 = vmatprep.subr.mxu0 0.0
    %845 = vmatpush1.msra.mxu0 0.0
    %846 = vmatprep.subr.mxu0 0.0
    %847 = vmatpush1.msra.mxu0 0.0
    %848 = vmatprep.subr.mxu0 0.0
    %849 = vmatpush1.msra.mxu0 0.0
    %850 = vmatprep.subr.mxu0 0.0
    %851 = vmatpush1.msra.mxu0 0.0
    %852 = vmatprep.subr.mxu0 0.0
    %853 = vmatpush1.msra.mxu0 0.0
    %854 = vmatprep.subr.mxu0 0.0
    %855 = vmatpush1.msra.mxu0 0.0
    %856 = vmatprep.subr.mxu0 0.0
    %857 = vmatpush1.msra.mxu0 0.0
    %858 = vmatprep.subr.mxu0 0.0
    %859 = vmatpush1.msra.mxu0 0.0
    %860 = vmatprep.subr.mxu0 0.0
    %861 = vmatpush1.msra.mxu0 0.0
    %862 = vmatprep.subr.mxu0 0.0
    %863 = vmatpush1.msra.mxu0 0.0
    %864 = vmatprep.mubr.f32.mxu0 0.0
    %865 = vmatmul.mubr.f32.gmra.mrb[0].mxu0 %v798
    %v866 = vpop.f32.mrb[0].mxu0
    %v867 = vadd.f32 0.0, %v866
    %v868 = vpop.f32.mrb[0].mxu0
    %v869 = vadd.f32 0.0, %v868
    %870 = vdwg.mxu0
    %v871 = vadd.f32 %v331, %v867
    %v872 = vadd.f32 %v332, %v869
    %s873 = scalar_lea.vmem %s3, 288
    %v874 = vld [vmem:[%s873] sm:$0xff]
    %v875 = vld [vmem:[%s873 + $0x8] sm:$0xff]
    %v876 = vld [vmem:[%s873 + $0x10] sm:$0xff]
    %v877 = vld [vmem:[%s873 + $0x18] sm:$0xff]
    %v878 = vrot.slane %v136, 2
    %v879 = vsel %vm160, %v878, 0
    %881 = vmatprep.subr.mxu0 %v875
    %882 = vmatpush1.msra.mxu0 %v874
    %883 = vmatprep.subr.mxu0 %v877
    %884 = vmatpush1.msra.mxu0 %v876
    %885 = vmatprep.subr.mxu0 0.0
    %886 = vmatpush1.msra.mxu0 0.0
    %887 = vmatprep.subr.mxu0 0.0
    %888 = vmatpush1.msra.mxu0 0.0
    %889 = vmatprep.subr.mxu0 0.0
    %890 = vmatpush1.msra.mxu0 0.0
    %891 = vmatprep.subr.mxu0 0.0
    %892 = vmatpush1.msra.mxu0 0.0
    %893 = vmatprep.subr.mxu0 0.0
    %894 = vmatpush1.msra.mxu0 0.0
    %895 = vmatprep.subr.mxu0 0.0
    %896 = vmatpush1.msra.mxu0 0.0
    %897 = vmatprep.subr.mxu0 0.0
    %898 = vmatpush1.msra.mxu0 0.0
    %899 = vmatprep.subr.mxu0 0.0
    %900 = vmatpush1.msra.mxu0 0.0
    %901 = vmatprep.subr.mxu0 0.0
    %902 = vmatpush1.msra.mxu0 0.0
    %903 = vmatprep.subr.mxu0 0.0
    %904 = vmatpush1.msra.mxu0 0.0
    %905 = vmatprep.subr.mxu0 0.0
    %906 = vmatpush1.msra.mxu0 0.0
    %907 = vmatprep.subr.mxu0 0.0
    %908 = vmatpush1.msra.mxu0 0.0
    %909 = vmatprep.subr.mxu0 0.0
    %910 = vmatpush1.msra.mxu0 0.0
    %911 = vmatprep.subr.mxu0 0.0
    %912 = vmatpush1.msra.mxu0 0.0
    %913 = vmatprep.subr.mxu0 0.0
    %914 = vmatpush1.msra.mxu0 0.0
    %915 = vmatprep.subr.mxu0 0.0
    %916 = vmatpush1.msra.mxu0 0.0
    %917 = vmatprep.subr.mxu0 0.0
    %918 = vmatpush1.msra.mxu0 0.0
    %919 = vmatprep.subr.mxu0 0.0
    %920 = vmatpush1.msra.mxu0 0.0
    %921 = vmatprep.subr.mxu0 0.0
    %922 = vmatpush1.msra.mxu0 0.0
    %923 = vmatprep.subr.mxu0 0.0
    %924 = vmatpush1.msra.mxu0 0.0
    %925 = vmatprep.subr.mxu0 0.0
    %926 = vmatpush1.msra.mxu0 0.0
    %927 = vmatprep.subr.mxu0 0.0
    %928 = vmatpush1.msra.mxu0 0.0
    %929 = vmatprep.subr.mxu0 0.0
    %930 = vmatpush1.msra.mxu0 0.0
    %931 = vmatprep.subr.mxu0 0.0
    %932 = vmatpush1.msra.mxu0 0.0
    %933 = vmatprep.subr.mxu0 0.0
    %934 = vmatpush1.msra.mxu0 0.0
    %935 = vmatprep.subr.mxu0 0.0
    %936 = vmatpush1.msra.mxu0 0.0
    %937 = vmatprep.subr.mxu0 0.0
    %938 = vmatpush1.msra.mxu0 0.0
    %939 = vmatprep.subr.mxu0 0.0
    %940 = vmatpush1.msra.mxu0 0.0
    %941 = vmatprep.subr.mxu0 0.0
    %942 = vmatpush1.msra.mxu0 0.0
    %943 = vmatprep.subr.mxu0 0.0
    %944 = vmatpush1.msra.mxu0 0.0
    %945 = vmatprep.mubr.f32.mxu0 0.0
    %946 = vmatmul.mubr.f32.gmra.mrb[0].mxu0 %v879
    %v947 = vpop.f32.mrb[0].mxu0
    %v948 = vadd.f32 0.0, %v947
    %v949 = vpop.f32.mrb[0].mxu0
    %v950 = vadd.f32 0.0, %v949
    %951 = vdwg.mxu0
    %v952 = vadd.f32 %v482, %v948
    %v953 = vadd.f32 %v484, %v950
    %s954 = scalar_lea.vmem %s3, 320
    %v955 = vld [vmem:[%s954] sm:$0xff]
    %v956 = vld [vmem:[%s954 + $0x8] sm:$0xff]
    %v957 = vld [vmem:[%s954 + $0x10] sm:$0xff]
    %v958 = vld [vmem:[%s954 + $0x18] sm:$0xff]
    %v959 = vrot.slane %v136, 4
    %v960 = vsel %vm160, %v959, 0
    %962 = vmatprep.subr.mxu0 %v956
    %963 = vmatpush1.msra.mxu0 %v955
    %964 = vmatprep.subr.mxu0 %v958
    %965 = vmatpush1.msra.mxu0 %v957
    %966 = vmatprep.subr.mxu0 0.0
    %967 = vmatpush1.msra.mxu0 0.0
    %968 = vmatprep.subr.mxu0 0.0
    %969 = vmatpush1.msra.mxu0 0.0
    %970 = vmatprep.subr.mxu0 0.0
    %971 = vmatpush1.msra.mxu0 0.0
    %972 = vmatprep.subr.mxu0 0.0
    %973 = vmatpush1.msra.mxu0 0.0
    %974 = vmatprep.subr.mxu0 0.0
    %975 = vmatpush1.msra.mxu0 0.0
    %976 = vmatprep.subr.mxu0 0.0
    %977 = vmatpush1.msra.mxu0 0.0
    %978 = vmatprep.subr.mxu0 0.0
    %979 = vmatpush1.msra.mxu0 0.0
    %980 = vmatprep.subr.mxu0 0.0
    %981 = vmatpush1.msra.mxu0 0.0
    %982 = vmatprep.subr.mxu0 0.0
    %983 = vmatpush1.msra.mxu0 0.0
    %984 = vmatprep.subr.mxu0 0.0
    %985 = vmatpush1.msra.mxu0 0.0
    %986 = vmatprep.subr.mxu0 0.0
    %987 = vmatpush1.msra.mxu0 0.0
    %988 = vmatprep.subr.mxu0 0.0
    %989 = vmatpush1.msra.mxu0 0.0
    %990 = vmatprep.subr.mxu0 0.0
    %991 = vmatpush1.msra.mxu0 0.0
    %992 = vmatprep.subr.mxu0 0.0
    %993 = vmatpush1.msra.mxu0 0.0
    %994 = vmatprep.subr.mxu0 0.0
    %995 = vmatpush1.msra.mxu0 0.0
    %996 = vmatprep.subr.mxu0 0.0
    %997 = vmatpush1.msra.mxu0 0.0
    %998 = vmatprep.subr.mxu0 0.0
    %999 = vmatpush1.msra.mxu0 0.0
    %1000 = vmatprep.subr.mxu0 0.0
    %1001 = vmatpush1.msra.mxu0 0.0
    %1002 = vmatprep.subr.mxu0 0.0
    %1003 = vmatpush1.msra.mxu0 0.0
    %1004 = vmatprep.subr.mxu0 0.0
    %1005 = vmatpush1.msra.mxu0 0.0
    %1006 = vmatprep.subr.mxu0 0.0
    %1007 = vmatpush1.msra.mxu0 0.0
    %1008 = vmatprep.subr.mxu0 0.0
    %1009 = vmatpush1.msra.mxu0 0.0
    %1010 = vmatprep.subr.mxu0 0.0
    %1011 = vmatpush1.msra.mxu0 0.0
    %1012 = vmatprep.subr.mxu0 0.0
    %1013 = vmatpush1.msra.mxu0 0.0
    %1014 = vmatprep.subr.mxu0 0.0
    %1015 = vmatpush1.msra.mxu0 0.0
    %1016 = vmatprep.subr.mxu0 0.0
    %1017 = vmatpush1.msra.mxu0 0.0
    %1018 = vmatprep.subr.mxu0 0.0
    %1019 = vmatpush1.msra.mxu0 0.0
    %1020 = vmatprep.subr.mxu0 0.0
    %1021 = vmatpush1.msra.mxu0 0.0
    %1022 = vmatprep.subr.mxu0 0.0
    %1023 = vmatpush1.msra.mxu0 0.0
    %1024 = vmatprep.subr.mxu0 0.0
    %1025 = vmatpush1.msra.mxu0 0.0
    %1026 = vmatprep.mubr.f32.mxu0 0.0
    %1027 = vmatmul.mubr.f32.gmra.mrb[0].mxu0 %v960
    %v1028 = vpop.f32.mrb[0].mxu0
    %v1029 = vadd.f32 0.0, %v1028
    %v1030 = vpop.f32.mrb[0].mxu0
    %v1031 = vadd.f32 0.0, %v1030
    %1032 = vdwg.mxu0
    %v1033 = vadd.f32 %v635, %v1029
    %v1034 = vadd.f32 %v637, %v1031
    %s1035 = scalar_lea.vmem %s3, 352
    %v1036 = vld [vmem:[%s1035] sm:$0xff]
    %v1037 = vld [vmem:[%s1035 + $0x8] sm:$0xff]
    %v1038 = vld [vmem:[%s1035 + $0x10] sm:$0xff]
    %v1039 = vld [vmem:[%s1035 + $0x18] sm:$0xff]
    %v1040 = vrot.slane %v136, 6
    %v1041 = vsel %vm160, %v1040, 0
    %1043 = vmatprep.subr.mxu0 %v1037
    %1044 = vmatpush1.msra.mxu0 %v1036
    %1045 = vmatprep.subr.mxu0 %v1039
    %1046 = vmatpush1.msra.mxu0 %v1038
    %1047 = vmatprep.subr.mxu0 0.0
    %1048 = vmatpush1.msra.mxu0 0.0
    %1049 = vmatprep.subr.mxu0 0.0
    %1050 = vmatpush1.msra.mxu0 0.0
    %1051 = vmatprep.subr.mxu0 0.0
    %1052 = vmatpush1.msra.mxu0 0.0
    %1053 = vmatprep.subr.mxu0 0.0
    %1054 = vmatpush1.msra.mxu0 0.0
    %1055 = vmatprep.subr.mxu0 0.0
    %1056 = vmatpush1.msra.mxu0 0.0
    %1057 = vmatprep.subr.mxu0 0.0
    %1058 = vmatpush1.msra.mxu0 0.0
    %1059 = vmatprep.subr.mxu0 0.0
    %1060 = vmatpush1.msra.mxu0 0.0
    %1061 = vmatprep.subr.mxu0 0.0
    %1062 = vmatpush1.msra.mxu0 0.0
    %1063 = vmatprep.subr.mxu0 0.0
    %1064 = vmatpush1.msra.mxu0 0.0
    %1065 = vmatprep.subr.mxu0 0.0
    %1066 = vmatpush1.msra.mxu0 0.0
    %1067 = vmatprep.subr.mxu0 0.0
    %1068 = vmatpush1.msra.mxu0 0.0
    %1069 = vmatprep.subr.mxu0 0.0
    %1070 = vmatpush1.msra.mxu0 0.0
    %1071 = vmatprep.subr.mxu0 0.0
    %1072 = vmatpush1.msra.mxu0 0.0
    %1073 = vmatprep.subr.mxu0 0.0
    %1074 = vmatpush1.msra.mxu0 0.0
    %1075 = vmatprep.subr.mxu0 0.0
    %1076 = vmatpush1.msra.mxu0 0.0
    %1077 = vmatprep.subr.mxu0 0.0
    %1078 = vmatpush1.msra.mxu0 0.0
    %1079 = vmatprep.subr.mxu0 0.0
    %1080 = vmatpush1.msra.mxu0 0.0
    %1081 = vmatprep.subr.mxu0 0.0
    %1082 = vmatpush1.msra.mxu0 0.0
    %1083 = vmatprep.subr.mxu0 0.0
    %1084 = vmatpush1.msra.mxu0 0.0
    %1085 = vmatprep.subr.mxu0 0.0
    %1086 = vmatpush1.msra.mxu0 0.0
    %1087 = vmatprep.subr.mxu0 0.0
    %1088 = vmatpush1.msra.mxu0 0.0
    %1089 = vmatprep.subr.mxu0 0.0
    %1090 = vmatpush1.msra.mxu0 0.0
    %1091 = vmatprep.subr.mxu0 0.0
    %1092 = vmatpush1.msra.mxu0 0.0
    %1093 = vmatprep.subr.mxu0 0.0
    %1094 = vmatpush1.msra.mxu0 0.0
    %1095 = vmatprep.subr.mxu0 0.0
    %1096 = vmatpush1.msra.mxu0 0.0
    %1097 = vmatprep.subr.mxu0 0.0
    %1098 = vmatpush1.msra.mxu0 0.0
    %1099 = vmatprep.subr.mxu0 0.0
    %1100 = vmatpush1.msra.mxu0 0.0
    %1101 = vmatprep.subr.mxu0 0.0
    %1102 = vmatpush1.msra.mxu0 0.0
    %1103 = vmatprep.subr.mxu0 0.0
    %1104 = vmatpush1.msra.mxu0 0.0
    %1105 = vmatprep.subr.mxu0 0.0
    %1106 = vmatpush1.msra.mxu0 0.0
    %1107 = vmatprep.mubr.f32.mxu0 0.0
    %1108 = vmatmul.mubr.f32.gmra.mrb[0].mxu0 %v1041
    %v1109 = vpop.f32.mrb[0].mxu0
    %v1110 = vadd.f32 0.0, %v1109
    %v1111 = vpop.f32.mrb[0].mxu0
    %v1112 = vadd.f32 0.0, %v1111
    %1113 = vdwg.mxu0
    %v1114 = vadd.f32 %v788, %v1110
    %v1115 = vadd.f32 %v790, %v1112
    %s1116 = scalar_lea.vmem %s3, 384
    %v1117 = vld [vmem:[%s1116] sm:$0xff]
    %v1118 = vld [vmem:[%s1116 + $0x8] sm:$0xff]
    %v1119 = vld [vmem:[%s1116 + $0x10] sm:$0xff]
    %v1120 = vld [vmem:[%s1116 + $0x18] sm:$0xff]
    %v1122 = vsel %vm160, %v141, 0
    %1124 = vmatprep.subr.mxu0 %v1118
    %1125 = vmatpush1.msra.mxu0 %v1117
    %1126 = vmatprep.subr.mxu0 %v1120
    %1127 = vmatpush1.msra.mxu0 %v1119
    %1128 = vmatprep.subr.mxu0 0.0
    %1129 = vmatpush1.msra.mxu0 0.0
    %1130 = vmatprep.subr.mxu0 0.0
    %1131 = vmatpush1.msra.mxu0 0.0
    %1132 = vmatprep.subr.mxu0 0.0
    %1133 = vmatpush1.msra.mxu0 0.0
    %1134 = vmatprep.subr.mxu0 0.0
    %1135 = vmatpush1.msra.mxu0 0.0
    %1136 = vmatprep.subr.mxu0 0.0
    %1137 = vmatpush1.msra.mxu0 0.0
    %1138 = vmatprep.subr.mxu0 0.0
    %1139 = vmatpush1.msra.mxu0 0.0
    %1140 = vmatprep.subr.mxu0 0.0
    %1141 = vmatpush1.msra.mxu0 0.0
    %1142 = vmatprep.subr.mxu0 0.0
    %1143 = vmatpush1.msra.mxu0 0.0
    %1144 = vmatprep.subr.mxu0 0.0
    %1145 = vmatpush1.msra.mxu0 0.0
    %1146 = vmatprep.subr.mxu0 0.0
    %1147 = vmatpush1.msra.mxu0 0.0
    %1148 = vmatprep.subr.mxu0 0.0
    %1149 = vmatpush1.msra.mxu0 0.0
    %1150 = vmatprep.subr.mxu0 0.0
    %1151 = vmatpush1.msra.mxu0 0.0
    %1152 = vmatprep.subr.mxu0 0.0
    %1153 = vmatpush1.msra.mxu0 0.0
    %1154 = vmatprep.subr.mxu0 0.0
    %1155 = vmatpush1.msra.mxu0 0.0
    %1156 = vmatprep.subr.mxu0 0.0
    %1157 = vmatpush1.msra.mxu0 0.0
    %1158 = vmatprep.subr.mxu0 0.0
    %1159 = vmatpush1.msra.mxu0 0.0
    %1160 = vmatprep.subr.mxu0 0.0
    %1161 = vmatpush1.msra.mxu0 0.0
    %1162 = vmatprep.subr.mxu0 0.0
    %1163 = vmatpush1.msra.mxu0 0.0
    %1164 = vmatprep.subr.mxu0 0.0
    %1165 = vmatpush1.msra.mxu0 0.0
    %1166 = vmatprep.subr.mxu0 0.0
    %1167 = vmatpush1.msra.mxu0 0.0
    %1168 = vmatprep.subr.mxu0 0.0
    %1169 = vmatpush1.msra.mxu0 0.0
    %1170 = vmatprep.subr.mxu0 0.0
    %1171 = vmatpush1.msra.mxu0 0.0
    %1172 = vmatprep.subr.mxu0 0.0
    %1173 = vmatpush1.msra.mxu0 0.0
    %1174 = vmatprep.subr.mxu0 0.0
    %1175 = vmatpush1.msra.mxu0 0.0
    %1176 = vmatprep.subr.mxu0 0.0
    %1177 = vmatpush1.msra.mxu0 0.0
    %1178 = vmatprep.subr.mxu0 0.0
    %1179 = vmatpush1.msra.mxu0 0.0
    %1180 = vmatprep.subr.mxu0 0.0
    %1181 = vmatpush1.msra.mxu0 0.0
    %1182 = vmatprep.subr.mxu0 0.0
    %1183 = vmatpush1.msra.mxu0 0.0
    %1184 = vmatprep.subr.mxu0 0.0
    %1185 = vmatpush1.msra.mxu0 0.0
    %1186 = vmatprep.subr.mxu0 0.0
    %1187 = vmatpush1.msra.mxu0 0.0
    %1188 = vmatprep.mubr.f32.mxu0 0.0
    %1189 = vmatmul.mubr.f32.gmra.mrb[0].mxu0 %v1122
    %v1190 = vpop.f32.mrb[0].mxu0
    %v1191 = vadd.f32 0.0, %v1190
    %v1192 = vpop.f32.mrb[0].mxu0
    %v1193 = vadd.f32 0.0, %v1192
    %1194 = vdwg.mxu0
    %v1195 = vadd.f32 %v871, %v1191
    %v1196 = vadd.f32 %v872, %v1193
    %s1197 = scalar_lea.vmem %s3, 416
    %v1198 = vld [vmem:[%s1197] sm:$0xff]
    %v1199 = vld [vmem:[%s1197 + $0x8] sm:$0xff]
    %v1200 = vld [vmem:[%s1197 + $0x10] sm:$0xff]
    %v1201 = vld [vmem:[%s1197 + $0x18] sm:$0xff]
    %v1202 = vrot.slane %v141, 2
    %v1203 = vsel %vm160, %v1202, 0
    %1205 = vmatprep.subr.mxu0 %v1199
    %1206 = vmatpush1.msra.mxu0 %v1198
    %1207 = vmatprep.subr.mxu0 %v1201
    %1208 = vmatpush1.msra.mxu0 %v1200
    %1209 = vmatprep.subr.mxu0 0.0
    %1210 = vmatpush1.msra.mxu0 0.0
    %1211 = vmatprep.subr.mxu0 0.0
    %1212 = vmatpush1.msra.mxu0 0.0
    %1213 = vmatprep.subr.mxu0 0.0
    %1214 = vmatpush1.msra.mxu0 0.0
    %1215 = vmatprep.subr.mxu0 0.0
    %1216 = vmatpush1.msra.mxu0 0.0
    %1217 = vmatprep.subr.mxu0 0.0
    %1218 = vmatpush1.msra.mxu0 0.0
    %1219 = vmatprep.subr.mxu0 0.0
    %1220 = vmatpush1.msra.mxu0 0.0
    %1221 = vmatprep.subr.mxu0 0.0
    %1222 = vmatpush1.msra.mxu0 0.0
    %1223 = vmatprep.subr.mxu0 0.0
    %1224 = vmatpush1.msra.mxu0 0.0
    %1225 = vmatprep.subr.mxu0 0.0
    %1226 = vmatpush1.msra.mxu0 0.0
    %1227 = vmatprep.subr.mxu0 0.0
    %1228 = vmatpush1.msra.mxu0 0.0
    %1229 = vmatprep.subr.mxu0 0.0
    %1230 = vmatpush1.msra.mxu0 0.0
    %1231 = vmatprep.subr.mxu0 0.0
    %1232 = vmatpush1.msra.mxu0 0.0
    %1233 = vmatprep.subr.mxu0 0.0
    %1234 = vmatpush1.msra.mxu0 0.0
    %1235 = vmatprep.subr.mxu0 0.0
    %1236 = vmatpush1.msra.mxu0 0.0
    %1237 = vmatprep.subr.mxu0 0.0
    %1238 = vmatpush1.msra.mxu0 0.0
    %1239 = vmatprep.subr.mxu0 0.0
    %1240 = vmatpush1.msra.mxu0 0.0
    %1241 = vmatprep.subr.mxu0 0.0
    %1242 = vmatpush1.msra.mxu0 0.0
    %1243 = vmatprep.subr.mxu0 0.0
    %1244 = vmatpush1.msra.mxu0 0.0
    %1245 = vmatprep.subr.mxu0 0.0
    %1246 = vmatpush1.msra.mxu0 0.0
    %1247 = vmatprep.subr.mxu0 0.0
    %1248 = vmatpush1.msra.mxu0 0.0
    %1249 = vmatprep.subr.mxu0 0.0
    %1250 = vmatpush1.msra.mxu0 0.0
    %1251 = vmatprep.subr.mxu0 0.0
    %1252 = vmatpush1.msra.mxu0 0.0
    %1253 = vmatprep.subr.mxu0 0.0
    %1254 = vmatpush1.msra.mxu0 0.0
    %1255 = vmatprep.subr.mxu0 0.0
    %1256 = vmatpush1.msra.mxu0 0.0
    %1257 = vmatprep.subr.mxu0 0.0
    %1258 = vmatpush1.msra.mxu0 0.0
    %1259 = vmatprep.subr.mxu0 0.0
    %1260 = vmatpush1.msra.mxu0 0.0
    %1261 = vmatprep.subr.mxu0 0.0
    %1262 = vmatpush1.msra.mxu0 0.0
    %1263 = vmatprep.subr.mxu0 0.0
    %1264 = vmatpush1.msra.mxu0 0.0
    %1265 = vmatprep.subr.mxu0 0.0
    %1266 = vmatpush1.msra.mxu0 0.0
    %1267 = vmatprep.subr.mxu0 0.0
    %1268 = vmatpush1.msra.mxu0 0.0
    %1269 = vmatprep.mubr.f32.mxu0 0.0
    %1270 = vmatmul.mubr.f32.gmra.mrb[0].mxu0 %v1203
    %v1271 = vpop.f32.mrb[0].mxu0
    %v1272 = vadd.f32 0.0, %v1271
    %v1273 = vpop.f32.mrb[0].mxu0
    %v1274 = vadd.f32 0.0, %v1273
    %1275 = vdwg.mxu0
    %v1276 = vadd.f32 %v952, %v1272
    %v1277 = vadd.f32 %v953, %v1274
    %s1278 = scalar_lea.vmem %s3, 448
    %v1279 = vld [vmem:[%s1278] sm:$0xff]
    %v1280 = vld [vmem:[%s1278 + $0x8] sm:$0xff]
    %v1281 = vld [vmem:[%s1278 + $0x10] sm:$0xff]
    %v1282 = vld [vmem:[%s1278 + $0x18] sm:$0xff]
    %v1283 = vrot.slane %v141, 4
    %v1284 = vsel %vm160, %v1283, 0
    %1286 = vmatprep.subr.mxu0 %v1280
    %1287 = vmatpush1.msra.mxu0 %v1279
    %1288 = vmatprep.subr.mxu0 %v1282
    %1289 = vmatpush1.msra.mxu0 %v1281
    %1290 = vmatprep.subr.mxu0 0.0
    %1291 = vmatpush1.msra.mxu0 0.0
    %1292 = vmatprep.subr.mxu0 0.0
    %1293 = vmatpush1.msra.mxu0 0.0
    %1294 = vmatprep.subr.mxu0 0.0
    %1295 = vmatpush1.msra.mxu0 0.0
    %1296 = vmatprep.subr.mxu0 0.0
    %1297 = vmatpush1.msra.mxu0 0.0
    %1298 = vmatprep.subr.mxu0 0.0
    %1299 = vmatpush1.msra.mxu0 0.0
    %1300 = vmatprep.subr.mxu0 0.0
    %1301 = vmatpush1.msra.mxu0 0.0
    %1302 = vmatprep.subr.mxu0 0.0
    %1303 = vmatpush1.msra.mxu0 0.0
    %1304 = vmatprep.subr.mxu0 0.0
    %1305 = vmatpush1.msra.mxu0 0.0
    %1306 = vmatprep.subr.mxu0 0.0
    %1307 = vmatpush1.msra.mxu0 0.0
    %1308 = vmatprep.subr.mxu0 0.0
    %1309 = vmatpush1.msra.mxu0 0.0
    %1310 = vmatprep.subr.mxu0 0.0
    %1311 = vmatpush1.msra.mxu0 0.0
    %1312 = vmatprep.subr.mxu0 0.0
    %1313 = vmatpush1.msra.mxu0 0.0
    %1314 = vmatprep.subr.mxu0 0.0
    %1315 = vmatpush1.msra.mxu0 0.0
    %1316 = vmatprep.subr.mxu0 0.0
    %1317 = vmatpush1.msra.mxu0 0.0
    %1318 = vmatprep.subr.mxu0 0.0
    %1319 = vmatpush1.msra.mxu0 0.0
    %1320 = vmatprep.subr.mxu0 0.0
    %1321 = vmatpush1.msra.mxu0 0.0
    %1322 = vmatprep.subr.mxu0 0.0
    %1323 = vmatpush1.msra.mxu0 0.0
    %1324 = vmatprep.subr.mxu0 0.0
    %1325 = vmatpush1.msra.mxu0 0.0
    %1326 = vmatprep.subr.mxu0 0.0
    %1327 = vmatpush1.msra.mxu0 0.0
    %1328 = vmatprep.subr.mxu0 0.0
    %1329 = vmatpush1.msra.mxu0 0.0
    %1330 = vmatprep.subr.mxu0 0.0
    %1331 = vmatpush1.msra.mxu0 0.0
    %1332 = vmatprep.subr.mxu0 0.0
    %1333 = vmatpush1.msra.mxu0 0.0
    %1334 = vmatprep.subr.mxu0 0.0
    %1335 = vmatpush1.msra.mxu0 0.0
    %1336 = vmatprep.subr.mxu0 0.0
    %1337 = vmatpush1.msra.mxu0 0.0
    %1338 = vmatprep.subr.mxu0 0.0
    %1339 = vmatpush1.msra.mxu0 0.0
    %1340 = vmatprep.subr.mxu0 0.0
    %1341 = vmatpush1.msra.mxu0 0.0
    %1342 = vmatprep.subr.mxu0 0.0
    %1343 = vmatpush1.msra.mxu0 0.0
    %1344 = vmatprep.subr.mxu0 0.0
    %1345 = vmatpush1.msra.mxu0 0.0
    %1346 = vmatprep.subr.mxu0 0.0
    %1347 = vmatpush1.msra.mxu0 0.0
    %1348 = vmatprep.subr.mxu0 0.0
    %1349 = vmatpush1.msra.mxu0 0.0
    %1350 = vmatprep.mubr.f32.mxu0 0.0
    %1351 = vmatmul.mubr.f32.gmra.mrb[0].mxu0 %v1284
    %v1352 = vpop.f32.mrb[0].mxu0
    %v1353 = vadd.f32 0.0, %v1352
    %v1354 = vpop.f32.mrb[0].mxu0
    %v1355 = vadd.f32 0.0, %v1354
    %1356 = vdwg.mxu0
    %v1357 = vadd.f32 %v1033, %v1353
    %v1358 = vadd.f32 %v1034, %v1355
    %v1359 = vadd.f32 %v1195, %v1276
    %v1360 = vadd.f32 %v1196, %v1277
    %v1361 = vadd.f32 %v1357, %v1114
    %v1362 = vadd.f32 %v1358, %v1115
    %v1363 = vadd.f32 %v1359, %v1361
    %v1364 = vadd.f32 %v1360, %v1362
    %v1365 = vmax.f32 %v1363, 0.0
    %v1366 = vmax.f32 %v1364, 0.0
    %v1367 = vld [vmem:[%s5] sm:$0xff]
    %v1368 = vld [vmem:[%s5 + $0x8] sm:$0xff]
    %v1369 = vld [vmem:[%s5 + $0x10] sm:$0xff]
    %v1370 = vld [vmem:[%s5 + $0x18] sm:$0xff]
    %v1371 = vld [vmem:[%s5 + $0x20] sm:$0xff]
    %v1372 = vld [vmem:[%s5 + $0x28] sm:$0xff]
    %v1373 = vld [vmem:[%s5 + $0x30] sm:$0xff]
    %v1374 = vld [vmem:[%s5 + $0x38] sm:$0xff]
    %v1375 = vld [vmem:[%s5 + $0x40] sm:$0xff]
    %v1376 = vld [vmem:[%s5 + $0x48] sm:$0xff]
    %v1377 = vld [vmem:[%s5 + $0x50] sm:$0xff]
    %v1378 = vld [vmem:[%s5 + $0x58] sm:$0xff]
    %v1379 = vld [vmem:[%s5 + $0x60] sm:$0xff]
    %v1380 = vld [vmem:[%s5 + $0x68] sm:$0xff]
    %v1381 = vld [vmem:[%s5 + $0x70] sm:$0xff]
    %v1382 = vld [vmem:[%s5 + $0x78] sm:$0xff]
    %v1383 = vld [vmem:[%s5 + $0x80] sm:$0xff]
    %v1384 = vld [vmem:[%s5 + $0x88] sm:$0xff]
    %v1385 = vld [vmem:[%s5 + $0x90] sm:$0xff]
    %v1386 = vld [vmem:[%s5 + $0x98] sm:$0xff]
    %v1387 = vld [vmem:[%s5 + $0xa0] sm:$0xff]
    %v1388 = vld [vmem:[%s5 + $0xa8] sm:$0xff]
    %v1389 = vld [vmem:[%s5 + $0xb0] sm:$0xff]
    %v1390 = vld [vmem:[%s5 + $0xb8] sm:$0xff]
    %v1391 = vld [vmem:[%s5 + $0xc0] sm:$0xff]
    %v1392 = vld [vmem:[%s5 + $0xc8] sm:$0xff]
    %v1393 = vld [vmem:[%s5 + $0xd0] sm:$0xff]
    %v1394 = vld [vmem:[%s5 + $0xd8] sm:$0xff]
    %v1395 = vld [vmem:[%s5 + $0xe0] sm:$0xff]
    %v1396 = vld [vmem:[%s5 + $0xe8] sm:$0xff]
    %v1397 = vld [vmem:[%s5 + $0xf0] sm:$0xff]
    %v1398 = vld [vmem:[%s5 + $0xf8] sm:$0xff]
    %v1399 = vld [vmem:[%s6] sm:$0x1]
    %v1401 = vlaneseq
    %v1402 = vshrl.u32 %v1401, 7
    %v1403 = vsub.s32 0, %v1402
    %v1404 = vrot.slane %v1399, %v1403
    %1406 = vmatprep.subr.mxu0 0.0
    %1407 = vmatpush1.msra.mxu0 %v1367
    %1408 = vmatprep.subr.mxu0 0.0
    %1409 = vmatpush1.msra.mxu0 %v1368
    %1410 = vmatprep.subr.mxu0 0.0
    %1411 = vmatpush1.msra.mxu0 %v1369
    %1412 = vmatprep.subr.mxu0 0.0
    %1413 = vmatpush1.msra.mxu0 %v1370
    %1414 = vmatprep.subr.mxu0 0.0
    %1415 = vmatpush1.msra.mxu0 %v1371
    %1416 = vmatprep.subr.mxu0 0.0
    %1417 = vmatpush1.msra.mxu0 %v1372
    %1418 = vmatprep.subr.mxu0 0.0
    %1419 = vmatpush1.msra.mxu0 %v1373
    %1420 = vmatprep.subr.mxu0 0.0
    %1421 = vmatpush1.msra.mxu0 %v1374
    %1422 = vmatprep.subr.mxu0 0.0
    %1423 = vmatpush1.msra.mxu0 %v1375
    %1424 = vmatprep.subr.mxu0 0.0
    %1425 = vmatpush1.msra.mxu0 %v1376
    %1426 = vmatprep.subr.mxu0 0.0
    %1427 = vmatpush1.msra.mxu0 %v1377
    %1428 = vmatprep.subr.mxu0 0.0
    %1429 = vmatpush1.msra.mxu0 %v1378
    %1430 = vmatprep.subr.mxu0 0.0
    %1431 = vmatpush1.msra.mxu0 %v1379
    %1432 = vmatprep.subr.mxu0 0.0
    %1433 = vmatpush1.msra.mxu0 %v1380
    %1434 = vmatprep.subr.mxu0 0.0
    %1435 = vmatpush1.msra.mxu0 %v1381
    %1436 = vmatprep.subr.mxu0 0.0
    %1437 = vmatpush1.msra.mxu0 %v1382
    %1438 = vmatprep.subr.mxu0 0.0
    %1439 = vmatpush1.msra.mxu0 %v1383
    %1440 = vmatprep.subr.mxu0 0.0
    %1441 = vmatpush1.msra.mxu0 %v1384
    %1442 = vmatprep.subr.mxu0 0.0
    %1443 = vmatpush1.msra.mxu0 %v1385
    %1444 = vmatprep.subr.mxu0 0.0
    %1445 = vmatpush1.msra.mxu0 %v1386
    %1446 = vmatprep.subr.mxu0 0.0
    %1447 = vmatpush1.msra.mxu0 %v1387
    %1448 = vmatprep.subr.mxu0 0.0
    %1449 = vmatpush1.msra.mxu0 %v1388
    %1450 = vmatprep.subr.mxu0 0.0
    %1451 = vmatpush1.msra.mxu0 %v1389
    %1452 = vmatprep.subr.mxu0 0.0
    %1453 = vmatpush1.msra.mxu0 %v1390
    %1454 = vmatprep.subr.mxu0 0.0
    %1455 = vmatpush1.msra.mxu0 %v1391
    %1456 = vmatprep.subr.mxu0 0.0
    %1457 = vmatpush1.msra.mxu0 %v1392
    %1458 = vmatprep.subr.mxu0 0.0
    %1459 = vmatpush1.msra.mxu0 %v1393
    %1460 = vmatprep.subr.mxu0 0.0
    %1461 = vmatpush1.msra.mxu0 %v1394
    %1462 = vmatprep.subr.mxu0 0.0
    %1463 = vmatpush1.msra.mxu0 %v1395
    %1464 = vmatprep.subr.mxu0 0.0
    %1465 = vmatpush1.msra.mxu0 %v1396
    %1466 = vmatprep.subr.mxu0 0.0
    %1467 = vmatpush1.msra.mxu0 %v1397
    %1468 = vmatprep.subr.mxu0 0.0
    %1469 = vmatpush1.msra.mxu0 %v1398
    %1470 = vmatprep.mubr.f32.mxu0 %v1366
    %1471 = vmatmul.mubr.f32.gmra.mrb[0].mxu0 %v1365
    %v1472 = vpop.f32.mrb[0].mxu0
    %v1473 = vadd.f32 %v1404, %v1472
    %v1474 = vpop.f32.mrb[0].mxu0
    %1475 = vdwg.mxu0
    %vm1476 = vcmask 1041408
    %v1477 = vsel %vm1476, %v1473, -inf
    %v1478 = vrot.slane %v1477, 4
    %v1479 = vmax.f32 %v1477, %v1478
    %v1480 = vrot.slane %v1479, 2
    %v1481 = vmax.f32 %v1479, %v1480
    %v1482 = vrot.slane %v1481, 1
    %v1483 = vmax.f32 %v1481, %v1482
    %v1484 = vsub.f32 %v1473, %v1483
    %v1485 = vmul.f32 %v1484, 1.442695
    %v1486 = vpow.pop %v1485
    %v1487 = vsel %vm1476, %v1486, 0.0
    %v1488 = vrot.slane %v1487, 4
    %v1489 = vadd.f32 %v1487, %v1488
    %v1490 = vrot.slane %v1489, 2
    %v1491 = vadd.f32 %v1489, %v1490
    %v1492 = vrot.slane %v1491, 1
    %v1493 = vadd.f32 %v1491, %v1492
    %v1494 = vrcp.pop %v1493
    %v1495 = vmul.f32 %v1486, %v1494
    %1496 = vst [vmem:[#allocation2] sm:$0x3] %v1495
    // Predicated region
    $region30: #{cnn2d_forward.1} parent=1 // pred_check
      _
    $region31: #{cnn2d_forward.1} parent=1 // pred_check_branch
      %1498 = sbr.rel (0) target = $region33
    $region32: #{cnn2d_forward.1} parent=1 // pred_region
      %s1500 = ssub.s32 32, 32
      %1501 = vsyncadd [#allocation3], %s1500
      %s1503 = sshll.u32 [#allocation2], 4
      %s1504 = int_to_ptr.vmem [resolvable:$true] %s1503
      %1506 = dma.vmem_to_hbm [thread:$0]  %s1504, 32, %s7, [#allocation3]
    $region33: #{cnn2d_forward.1} parent=1 // pred_fallthru
      _
    // Predicated region
    $region34: #{cnn2d_forward.1} parent=1 // pred_check
      _
    $region35: #{cnn2d_forward.1} parent=1 // pred_check_branch
      %1508 = sbr.rel (0) target = $region37
    $region36: #{cnn2d_forward.1} parent=1 // pred_region
      %1509 = dma.done [#allocation3], 32
    $region37: #{cnn2d_forward.1} parent=1 // pred_fallthru
      _
    %1510 = vsyncpa [#allocation3], 1

</llo_original>
